<compile_context>
chip_gen: v7x
topology: tpu7x:2x2x1
jax: 0.10.0
libtpu: 0.0.40
codegen_flags: <defaults>
</compile_context>

<pallas_src>
import functools
import math

import jax
import jax.numpy as jnp
import numpy as np
from jax.experimental import pallas as pl
from jax.experimental.pallas import tpu as pltpu


def _layer_norm(v, gamma, beta, eps=1e-5):
    mu = jnp.mean(v, axis=-1, keepdims=True)
    var = jnp.mean(jnp.square(v - mu), axis=-1, keepdims=True)
    return (v - mu) * jax.lax.rsqrt(var + eps) * gamma + beta


def _encoder_layer_kernel(*refs, num_heads, d_k, has_mask, compute_dtype):
    if has_mask:
        (xq_ref, xkv_ref, bias_ref, attn_w_ref, attn_b_ref,
         w1_ref, b1_ref, w2_ref, b2_ref, ln_g_ref, ln_b_ref, out_ref) = refs
    else:
        (xq_ref, xkv_ref, attn_w_ref, attn_b_ref,
         w1_ref, b1_ref, w2_ref, b2_ref, ln_g_ref, ln_b_ref, out_ref) = refs
        bias_ref = None

    cd = compute_dtype
    approx = jnp.dtype(cd) != jnp.dtype(jnp.float32)

    x_q = xq_ref[0]                    # (TQ, D) f32 — query tile (residual path)
    x_kv = xkv_ref[0]                  # (S,  D) f32 — full sequence for K/V
    tq, d_model = x_q.shape
    sk = x_kv.shape[0]

    xq_c = x_q.astype(cd)
    xkv_c = x_kv.astype(cd)

    # ---- QKV projections (MXU, f32 accumulation) ----------------------------
    q = jnp.dot(xq_c, attn_w_ref[0], preferred_element_type=jnp.float32) + attn_b_ref[0]
    k = jnp.dot(xkv_c, attn_w_ref[1], preferred_element_type=jnp.float32) + attn_b_ref[1]
    v = jnp.dot(xkv_c, attn_w_ref[2], preferred_element_type=jnp.float32) + attn_b_ref[2]

    # Fold 1/sqrt(d_k) into Q once (instead of scaling the (TQ,S) scores per head).
    q = q * jnp.float32(1.0 / math.sqrt(d_k))

    # ---- batched multi-head attention (single dot_general, H = batch dim) ---
    qh = q.reshape(tq, num_heads, d_k).transpose(1, 0, 2)   # (H, TQ, d_k)
    kh = k.reshape(sk, num_heads, d_k).transpose(1, 0, 2)   # (H, S,  d_k)
    vh = v.reshape(sk, num_heads, d_k).transpose(1, 0, 2)   # (H, S,  d_k)

    scores = jnp.einsum('hqd,hkd->hqk', qh.astype(cd), kh.astype(cd),
                        preferred_element_type=jnp.float32)  # (H, TQ, S)
    if has_mask:
        # Additive bias (0 keep / -1e9 masked), precomputed once in the wrapper.
        # Note: for a fully-masked row this yields softmax over the raw scores
        # instead of a uniform distribution (PyTorch masked_fill semantics);
        # identical whenever each query attends to >=1 key.
        scores = scores + bias_ref[0][None, :, :]

    m = jnp.max(scores, axis=-1, keepdims=True)
    e = jnp.exp(scores - m)
    denom = jnp.sum(e, axis=-1, keepdims=True)
    attn = e * pl.reciprocal(denom, approx=approx)           # EUP when approx

    # TODO(synk): for very long S, switch to an online-softmax loop over S tiles
    # (m/l/acc scratch) instead of materializing the full (H, TQ, S) scores.
    ctx = jnp.einsum('hqk,hkd->hqd', attn.astype(cd), vh.astype(cd),
                     preferred_element_type=jnp.float32)     # (H, TQ, d_k)
    ctx = ctx.transpose(1, 0, 2).reshape(tq, d_model)

    sa = jnp.dot(ctx.astype(cd), attn_w_ref[3],
                 preferred_element_type=jnp.float32) + attn_b_ref[3]

    # ---- residual + LayerNorm 1 (dropout = identity) -------------------------
    x1 = _layer_norm(x_q + sa, ln_g_ref[0], ln_b_ref[0])

    # ---- position-wise feed-forward + residual + LayerNorm 2 ------------------
    # TODO(synk): tile Dff (K-tiling with accumulator scratch) for large d_ff on
    # v7x's 64 MiB VMEM.
    h = jnp.maximum(
        jnp.dot(x1.astype(cd), w1_ref[...], preferred_element_type=jnp.float32)
        + b1_ref[...], 0.0)
    ff = jnp.dot(h.astype(cd), w2_ref[...],
                 preferred_element_type=jnp.float32) + b2_ref[...]
    x2 = _layer_norm(x1 + ff, ln_g_ref[1], ln_b_ref[1])

    out_ref[0] = x2.astype(out_ref.dtype)


def encoder_layer(x, params, mask=None, *, num_heads, block_q=256,
                  compute_dtype=jnp.bfloat16):
    """Fused encoder layer.

    params:
      attn_w: (4, D, D)  stacked [Wq, Wk, Wv, Wo], (in, out) layout
      attn_b: (4, 1, D)
      w1: (D, Dff)  b1: (1, Dff)   w2: (Dff, D)  b2: (1, D)
      ln_g / ln_b: (2, 1, D)
    mask: optional (B, Sq, Sk); positions where mask == 0 are masked out.
    """
    B, S, D = x.shape
    assert D % num_heads == 0
    d_k = D // num_heads

    # Query-tile size: 128/256-aligned in production; fall back to the full
    # sequence when it does not divide evenly (e.g. tiny test shapes).
    tq = block_q if (S % block_q == 0) else S
    n_q = S // tq

    cd = compute_dtype
    attn_w = params['attn_w'].astype(cd)              # matmul operands -> cd
    w1 = params['w1'].astype(cd)
    w2 = params['w2'].astype(cd)
    attn_b = params['attn_b'].astype(jnp.float32)     # biases / LN stay f32
    b1 = params['b1'].astype(jnp.float32)
    b2 = params['b2'].astype(jnp.float32)
    ln_g = params['ln_g'].astype(jnp.float32)
    ln_b = params['ln_b'].astype(jnp.float32)

    has_mask = mask is not None
    kernel = functools.partial(_encoder_layer_kernel, num_heads=num_heads,
                               d_k=d_k, has_mask=has_mask, compute_dtype=cd)

    def rep(arr):   # grid-invariant (replicated) parameter
        n = arr.ndim
        return pl.BlockSpec(arr.shape, lambda b, qi, _n=n: (0,) * _n)

    in_specs = [
        pl.BlockSpec((1, tq, D), lambda b, qi: (b, qi, 0)),   # x (query tile)
        pl.BlockSpec((1, S, D), lambda b, qi: (b, 0, 0)),     # x (full, K/V)
    ]
    inputs = [x, x]
    if has_mask:
        bias = jnp.where(mask == 0, jnp.float32(-1e9), jnp.float32(0.0))
        in_specs.append(pl.BlockSpec((1, tq, S), lambda b, qi: (b, qi, 0)))
        inputs.append(bias)
    in_specs += [rep(attn_w), rep(attn_b), rep(w1), rep(b1),
                 rep(w2), rep(b2), rep(ln_g), rep(ln_b)]
    inputs += [attn_w, attn_b, w1, b1, w2, b2, ln_g, ln_b]

    return pl.pallas_call(
        kernel,
        grid=(B, n_q),
        in_specs=in_specs,
        out_specs=pl.BlockSpec((1, tq, D), lambda b, qi: (b, qi, 0)),
        out_shape=jax.ShapeDtypeStruct((B, S, D), jnp.float32),
        compiler_params=pltpu.CompilerParams(
            dimension_semantics=("parallel", "parallel")),
    )(*inputs)


# ---------------------------------------------------------------------------
# Pure-JAX reference (mirrors the PyTorch forward) for correctness checks.
# ---------------------------------------------------------------------------
def reference(x, mask, params, num_heads):
    B, S, D = x.shape
    d_k = D // num_heads
    aw, ab = params['attn_w'], params['attn_b']

    Q = x @ aw[0] + ab[0]
    K = x @ aw[1] + ab[1]
    V = x @ aw[2] + ab[2]
    Qh = Q.reshape(B, S, num_heads, d_k).transpose(0, 2, 1, 3)
    Kh = K.reshape(B, S, num_heads, d_k).transpose(0, 2, 1, 3)
    Vh = V.reshape(B, S, num_heads, d_k).transpose(0, 2, 1, 3)
    scores = jnp.einsum('bhqd,bhkd->bhqk', Qh, Kh) / math.sqrt(d_k)
    if mask is not None:
        scores = jnp.where(mask[:, None, :, :] == 0, -1e9, scores)
    attn = jax.nn.softmax(scores, axis=-1)
    ctx = jnp.einsum('bhqk,bhkd->bhqd', attn, Vh)
    ctx = ctx.transpose(0, 2, 1, 3).reshape(B, S, D)
    sa = ctx @ aw[3] + ab[3]

    def ln(v, g, bt):
        mu = v.mean(-1, keepdims=True)
        var = ((v - mu) ** 2).mean(-1, keepdims=True)
        return (v - mu) / jnp.sqrt(var + 1e-5) * g + bt

    x1 = ln(x + sa, params['ln_g'][0], params['ln_b'][0])
    h = jnp.maximum(x1 @ params['w1'] + params['b1'], 0.0)
    ff = h @ params['w2'] + params['b2']
    return ln(x1 + ff, params['ln_g'][1], params['ln_b'][1])


if __name__ == "__main__":
    B, S, D, H, Dff = 2, 8, 32, 4, 64

    key = jax.random.PRNGKey(0)
    ks = jax.random.split(key, 9)
    s = 0.1
    x = jax.random.normal(ks[0], (B, S, D), jnp.float32)

    # Padding mask: batch 0 attends to all 8 keys, batch 1 only to the first 6.
    valid = jnp.array([S, 6])
    key_ok = (jnp.arange(S)[None, :] < valid[:, None]).astype(jnp.float32)  # (B, S)
    mask = jnp.broadcast_to(key_ok[:, None, :], (B, S, S))                  # (B, Sq, Sk)

    params = {
        'attn_w': jax.random.normal(ks[1], (4, D, D), jnp.float32) * s,
        'attn_b': jax.random.normal(ks[2], (4, 1, D), jnp.float32) * s,
        'w1': jax.random.normal(ks[3], (D, Dff), jnp.float32) * s,
        'b1': jax.random.normal(ks[4], (1, Dff), jnp.float32) * s,
        'w2': jax.random.normal(ks[5], (Dff, D), jnp.float32) * s,
        'b2': jax.random.normal(ks[6], (1, D), jnp.float32) * s,
        'ln_g': jax.random.normal(ks[7], (2, 1, D), jnp.float32) * s + 1.0,
        'ln_b': jax.random.normal(ks[8], (2, 1, D), jnp.float32) * s,
    }

    ref = reference(x, mask, params, H)

    # 1) f32 matmul operands: tight check against the PyTorch-equivalent reference.
    out_f32 = jax.block_until_ready(
        encoder_layer(x, params, mask, num_heads=H, compute_dtype=jnp.float32))
    np.testing.assert_allclose(np.asarray(out_f32), np.asarray(ref),
                               rtol=2e-3, atol=2e-3)

    # 2) mask=None path (mask is Optional in the PyTorch module).
    out_nm = jax.block_until_ready(
        encoder_layer(x, params, None, num_heads=H, compute_dtype=jnp.float32))
    ref_nm = reference(x, None, params, H)
    np.testing.assert_allclose(np.asarray(out_nm), np.asarray(ref_nm),
                               rtol=2e-3, atol=2e-3)

    # 3) bf16 matmul operands with f32 accumulation / f32 LayerNorm statistics.
    out_bf16 = jax.block_until_ready(
        encoder_layer(x, params, mask, num_heads=H, compute_dtype=jnp.bfloat16))
    np.testing.assert_allclose(np.asarray(out_bf16), np.asarray(ref),
                               rtol=5e-2, atol=5e-2)

    print("KERNEL_OK")
</pallas_src>

<mosaic_0001>
module attributes {stable_mosaic.version = 11 : i64} {
  func.func @_encoder_layer_kernel(%arg0: i32, %arg1: i32, %arg2: memref<1x8x32xf32, #tpu.memory_space<vmem>>, %arg3: memref<1x8x32xf32, #tpu.memory_space<vmem>>, %arg4: memref<1x8x8xf32, #tpu.memory_space<vmem>>, %arg5: memref<4x32x32xf32, #tpu.memory_space<vmem>>, %arg6: memref<4x1x32xf32, #tpu.memory_space<vmem>>, %arg7: memref<32x64xf32, #tpu.memory_space<vmem>>, %arg8: memref<1x64xf32, #tpu.memory_space<vmem>>, %arg9: memref<64x32xf32, #tpu.memory_space<vmem>>, %arg10: memref<1x32xf32, #tpu.memory_space<vmem>>, %arg11: memref<2x1x32xf32, #tpu.memory_space<vmem>>, %arg12: memref<2x1x32xf32, #tpu.memory_space<vmem>>, %arg13: memref<1x8x32xf32, #tpu.memory_space<vmem>>) attributes {dimension_semantics = [#tpu.dimension_semantics<parallel>, #tpu.dimension_semantics<parallel>], iteration_bounds = array<i64: 2, 1>, scalar_prefetch = 0 : i64, scratch_operands = 0 : i64, tpu.core_type = #tpu.core_type<tc>, window_params = [{transform_indices = @transform_0, window_bounds = array<i64: 1, 8, 32>}, {transform_indices = @transform_1, window_bounds = array<i64: 1, 8, 32>}, {transform_indices = @transform_2, window_bounds = array<i64: 1, 8, 8>}, {pipeline_mode = #tpu.pipeline_mode<synchronous>, transform_indices = @transform_3, window_bounds = array<i64: 4, 32, 32>}, {pipeline_mode = #tpu.pipeline_mode<synchronous>, transform_indices = @transform_4, window_bounds = array<i64: 4, 1, 32>}, {pipeline_mode = #tpu.pipeline_mode<synchronous>, transform_indices = @transform_5, window_bounds = array<i64: 32, 64>}, {pipeline_mode = #tpu.pipeline_mode<synchronous>, transform_indices = @transform_6, window_bounds = array<i64: 1, 64>}, {pipeline_mode = #tpu.pipeline_mode<synchronous>, transform_indices = @transform_7, window_bounds = array<i64: 64, 32>}, {pipeline_mode = #tpu.pipeline_mode<synchronous>, transform_indices = @transform_8, window_bounds = array<i64: 1, 32>}, {pipeline_mode = #tpu.pipeline_mode<synchronous>, transform_indices = @transform_9, window_bounds = array<i64: 2, 1, 32>}, {pipeline_mode = #tpu.pipeline_mode<synchronous>, transform_indices = @transform_10, window_bounds = array<i64: 2, 1, 32>}, {transform_indices = @transform_11, window_bounds = array<i64: 1, 8, 32>}]} {
    %c0 = arith.constant 0 : index
    %c0_0 = arith.constant 0 : index
    %c0_1 = arith.constant 0 : index
    %0 = vector.load %arg2[%c0, %c0_0, %c0_1] : memref<1x8x32xf32, #tpu.memory_space<vmem>>, vector<1x8x32xf32>
    %1 = vector.shape_cast %0 : vector<1x8x32xf32> to vector<8x32xf32>
    %c0_2 = arith.constant 0 : index
    %c0_3 = arith.constant 0 : index
    %c0_4 = arith.constant 0 : index
    %2 = vector.load %arg3[%c0_2, %c0_3, %c0_4] : memref<1x8x32xf32, #tpu.memory_space<vmem>>, vector<1x8x32xf32>
    %3 = vector.shape_cast %2 : vector<1x8x32xf32> to vector<8x32xf32>
    %c0_5 = arith.constant 0 : index
    %c0_6 = arith.constant 0 : index
    %c0_7 = arith.constant 0 : index
    %4 = vector.load %arg5[%c0_5, %c0_6, %c0_7] : memref<4x32x32xf32, #tpu.memory_space<vmem>>, vector<1x32x32xf32>
    %5 = vector.shape_cast %4 : vector<1x32x32xf32> to vector<32x32xf32>
    %cst = arith.constant dense<0.000000e+00> : vector<8x32xf32>
    %6 = tpu.matmul %1, %5, %cst {dimension_numbers = #tpu.dot_dimension_numbers<[1], [0], [0], [1], [0, 0, 1, 1], [], []>} : vector<8x32xf32>, vector<32x32xf32>, vector<8x32xf32> -> vector<8x32xf32>
    %c0_8 = arith.constant 0 : index
    %c0_9 = arith.constant 0 : index
    %c0_10 = arith.constant 0 : index
    %7 = vector.load %arg6[%c0_8, %c0_9, %c0_10] : memref<4x1x32xf32, #tpu.memory_space<vmem>>, vector<1x1x32xf32>
    %8 = vector.shape_cast %7 : vector<1x1x32xf32> to vector<1x32xf32>
    %9 = vector.broadcast %8 : vector<1x32xf32> to vector<8x32xf32>
    %10 = arith.addf %6, %9 : vector<8x32xf32>
    %c1 = arith.constant 1 : index
    %c0_11 = arith.constant 0 : index
    %c0_12 = arith.constant 0 : index
    %11 = vector.load %arg5[%c1, %c0_11, %c0_12] : memref<4x32x32xf32, #tpu.memory_space<vmem>>, vector<1x32x32xf32>
    %12 = vector.shape_cast %11 : vector<1x32x32xf32> to vector<32x32xf32>
    %cst_13 = arith.constant dense<0.000000e+00> : vector<8x32xf32>
    %13 = tpu.matmul %3, %12, %cst_13 {dimension_numbers = #tpu.dot_dimension_numbers<[1], [0], [0], [1], [0, 0, 1, 1], [], []>} : vector<8x32xf32>, vector<32x32xf32>, vector<8x32xf32> -> vector<8x32xf32>
    %c1_14 = arith.constant 1 : index
    %c0_15 = arith.constant 0 : index
    %c0_16 = arith.constant 0 : index
    %14 = vector.load %arg6[%c1_14, %c0_15, %c0_16] : memref<4x1x32xf32, #tpu.memory_space<vmem>>, vector<1x1x32xf32>
    %15 = vector.shape_cast %14 : vector<1x1x32xf32> to vector<1x32xf32>
    %16 = vector.broadcast %15 : vector<1x32xf32> to vector<8x32xf32>
    %17 = arith.addf %13, %16 : vector<8x32xf32>
    %c2 = arith.constant 2 : index
    %c0_17 = arith.constant 0 : index
    %c0_18 = arith.constant 0 : index
    %18 = vector.load %arg5[%c2, %c0_17, %c0_18] : memref<4x32x32xf32, #tpu.memory_space<vmem>>, vector<1x32x32xf32>
    %19 = vector.shape_cast %18 : vector<1x32x32xf32> to vector<32x32xf32>
    %cst_19 = arith.constant dense<0.000000e+00> : vector<8x32xf32>
    %20 = tpu.matmul %3, %19, %cst_19 {dimension_numbers = #tpu.dot_dimension_numbers<[1], [0], [0], [1], [0, 0, 1, 1], [], []>} : vector<8x32xf32>, vector<32x32xf32>, vector<8x32xf32> -> vector<8x32xf32>
    %c2_20 = arith.constant 2 : index
    %c0_21 = arith.constant 0 : index
    %c0_22 = arith.constant 0 : index
    %21 = vector.load %arg6[%c2_20, %c0_21, %c0_22] : memref<4x1x32xf32, #tpu.memory_space<vmem>>, vector<1x1x32xf32>
    %22 = vector.shape_cast %21 : vector<1x1x32xf32> to vector<1x32xf32>
    %23 = vector.broadcast %22 : vector<1x32xf32> to vector<8x32xf32>
    %24 = arith.addf %20, %23 : vector<8x32xf32>
    %cst_23 = arith.constant 0.353553385 : f32
    %25 = vector.broadcast %cst_23 : f32 to vector<8x32xf32>
    %26 = arith.mulf %10, %25 : vector<8x32xf32>
    %27 = vector.shape_cast %26 : vector<8x32xf32> to vector<8x4x8xf32>
    %28 = tpu.transpose %27, [1, 0, 2] : vector<8x4x8xf32> -> vector<4x8x8xf32>
    %29 = vector.shape_cast %17 : vector<8x32xf32> to vector<8x4x8xf32>
    %30 = tpu.transpose %29, [1, 0, 2] : vector<8x4x8xf32> -> vector<4x8x8xf32>
    %31 = vector.shape_cast %24 : vector<8x32xf32> to vector<8x4x8xf32>
    %32 = tpu.transpose %31, [1, 0, 2] : vector<8x4x8xf32> -> vector<4x8x8xf32>
    "tpu.trace_start"() <{level = 10 : i32, message = "hqd,hkd->hqk"}> : () -> ()
    %cst_24 = arith.constant dense<0.000000e+00> : vector<4x8x8xf32>
    %33 = tpu.matmul %28, %30, %cst_24 {dimension_numbers = #tpu.dot_dimension_numbers<[2], [2], [1], [1], [0, 0, 0, 1, 1, 1], [0], [0]>} : vector<4x8x8xf32>, vector<4x8x8xf32>, vector<4x8x8xf32> -> vector<4x8x8xf32>
    "tpu.trace_stop"() : () -> ()
    %c0_25 = arith.constant 0 : index
    %c0_26 = arith.constant 0 : index
    %c0_27 = arith.constant 0 : index
    %34 = vector.load %arg4[%c0_25, %c0_26, %c0_27] : memref<1x8x8xf32, #tpu.memory_space<vmem>>, vector<1x8x8xf32>
    %35 = vector.shape_cast %34 : vector<1x8x8xf32> to vector<8x8xf32>
    %36 = vector.shape_cast %35 : vector<8x8xf32> to vector<1x8x8xf32>
    %37 = vector.broadcast %36 : vector<1x8x8xf32> to vector<4x8x8xf32>
    %38 = arith.addf %33, %37 : vector<4x8x8xf32>
    %cst_28 = arith.constant dense<0xFF800000> : vector<4x8xf32>
    %39 = vector.multi_reduction <maximumf>, %38, %cst_28 [2] : vector<4x8x8xf32> to vector<4x8xf32>
    %40 = vector.shape_cast %39 : vector<4x8xf32> to vector<4x8x1xf32>
    %41 = vector.broadcast %40 : vector<4x8x1xf32> to vector<4x8x8xf32>
    %42 = arith.subf %38, %41 : vector<4x8x8xf32>
    %43 = math.exp %42 : vector<4x8x8xf32>
    %cst_29 = arith.constant dense<0.000000e+00> : vector<4x8xf32>
    %44 = vector.multi_reduction <add>, %43, %cst_29 [2] : vector<4x8x8xf32> to vector<4x8xf32>
    %45 = vector.shape_cast %44 : vector<4x8xf32> to vector<4x8x1xf32>
    %46 = tpu.reciprocal %45 : vector<4x8x1xf32> -> vector<4x8x1xf32>
    %47 = vector.broadcast %46 : vector<4x8x1xf32> to vector<4x8x8xf32>
    %48 = arith.mulf %43, %47 : vector<4x8x8xf32>
    "tpu.trace_start"() <{level = 10 : i32, message = "hqk,hkd->hqd"}> : () -> ()
    %cst_30 = arith.constant dense<0.000000e+00> : vector<4x8x8xf32>
    %49 = tpu.matmul %48, %32, %cst_30 {dimension_numbers = #tpu.dot_dimension_numbers<[2], [1], [1], [2], [0, 0, 0, 1, 1, 2], [0], [0]>} : vector<4x8x8xf32>, vector<4x8x8xf32>, vector<4x8x8xf32> -> vector<4x8x8xf32>
    "tpu.trace_stop"() : () -> ()
    %50 = tpu.transpose %49, [1, 0, 2] : vector<4x8x8xf32> -> vector<8x4x8xf32>
    %51 = vector.shape_cast %50 : vector<8x4x8xf32> to vector<8x32xf32>
    %c3 = arith.constant 3 : index
    %c0_31 = arith.constant 0 : index
    %c0_32 = arith.constant 0 : index
    %52 = vector.load %arg5[%c3, %c0_31, %c0_32] : memref<4x32x32xf32, #tpu.memory_space<vmem>>, vector<1x32x32xf32>
    %53 = vector.shape_cast %52 : vector<1x32x32xf32> to vector<32x32xf32>
    %cst_33 = arith.constant dense<0.000000e+00> : vector<8x32xf32>
    %54 = tpu.matmul %51, %53, %cst_33 {dimension_numbers = #tpu.dot_dimension_numbers<[1], [0], [0], [1], [0, 0, 1, 1], [], []>} : vector<8x32xf32>, vector<32x32xf32>, vector<8x32xf32> -> vector<8x32xf32>
    %c3_34 = arith.constant 3 : index
    %c0_35 = arith.constant 0 : index
    %c0_36 = arith.constant 0 : index
    %55 = vector.load %arg6[%c3_34, %c0_35, %c0_36] : memref<4x1x32xf32, #tpu.memory_space<vmem>>, vector<1x1x32xf32>
    %56 = vector.shape_cast %55 : vector<1x1x32xf32> to vector<1x32xf32>
    %57 = vector.broadcast %56 : vector<1x32xf32> to vector<8x32xf32>
    %58 = arith.addf %54, %57 : vector<8x32xf32>
    %59 = arith.addf %1, %58 : vector<8x32xf32>
    %c0_37 = arith.constant 0 : index
    %c0_38 = arith.constant 0 : index
    %c0_39 = arith.constant 0 : index
    %60 = vector.load %arg11[%c0_37, %c0_38, %c0_39] : memref<2x1x32xf32, #tpu.memory_space<vmem>>, vector<1x1x32xf32>
    %61 = vector.shape_cast %60 : vector<1x1x32xf32> to vector<1x32xf32>
    %c0_40 = arith.constant 0 : index
    %c0_41 = arith.constant 0 : index
    %c0_42 = arith.constant 0 : index
    %62 = vector.load %arg12[%c0_40, %c0_41, %c0_42] : memref<2x1x32xf32, #tpu.memory_space<vmem>>, vector<1x1x32xf32>
    %63 = vector.shape_cast %62 : vector<1x1x32xf32> to vector<1x32xf32>
    %cst_43 = arith.constant dense<0.000000e+00> : vector<8xf32>
    %64 = vector.multi_reduction <add>, %59, %cst_43 [1] : vector<8x32xf32> to vector<8xf32>
    %65 = vector.shape_cast %64 : vector<8xf32> to vector<8x1xf32>
    %cst_44 = arith.constant 3.200000e+01 : f32
    %66 = vector.broadcast %cst_44 : f32 to vector<8x1xf32>
    %67 = arith.divf %65, %66 : vector<8x1xf32>
    %68 = vector.broadcast %67 : vector<8x1xf32> to vector<8x32xf32>
    %69 = arith.subf %59, %68 : vector<8x32xf32>
    %70 = arith.mulf %69, %69 : vector<8x32xf32>
    %cst_45 = arith.constant dense<0.000000e+00> : vector<8xf32>
    %71 = vector.multi_reduction <add>, %70, %cst_45 [1] : vector<8x32xf32> to vector<8xf32>
    %72 = vector.shape_cast %71 : vector<8xf32> to vector<8x1xf32>
    %cst_46 = arith.constant 3.200000e+01 : f32
    %73 = vector.broadcast %cst_46 : f32 to vector<8x1xf32>
    %74 = arith.divf %72, %73 : vector<8x1xf32>
    %75 = vector.broadcast %67 : vector<8x1xf32> to vector<8x32xf32>
    %76 = arith.subf %59, %75 : vector<8x32xf32>
    %cst_47 = arith.constant 9.99999974E-6 : f32
    %77 = vector.broadcast %cst_47 : f32 to vector<8x1xf32>
    %78 = arith.addf %74, %77 : vector<8x1xf32>
    %79 = math.rsqrt %78 : vector<8x1xf32>
    %80 = vector.broadcast %79 : vector<8x1xf32> to vector<8x32xf32>
    %81 = arith.mulf %76, %80 : vector<8x32xf32>
    %82 = vector.broadcast %61 : vector<1x32xf32> to vector<8x32xf32>
    %83 = arith.mulf %81, %82 : vector<8x32xf32>
    %84 = vector.broadcast %63 : vector<1x32xf32> to vector<8x32xf32>
    %85 = arith.addf %83, %84 : vector<8x32xf32>
    %c0_48 = arith.constant 0 : index
    %c0_49 = arith.constant 0 : index
    %86 = vector.load %arg7[%c0_48, %c0_49] : memref<32x64xf32, #tpu.memory_space<vmem>>, vector<32x64xf32>
    %cst_50 = arith.constant dense<0.000000e+00> : vector<8x64xf32>
    %87 = tpu.matmul %85, %86, %cst_50 {dimension_numbers = #tpu.dot_dimension_numbers<[1], [0], [0], [1], [0, 0, 1, 1], [], []>} : vector<8x32xf32>, vector<32x64xf32>, vector<8x64xf32> -> vector<8x64xf32>
    %c0_51 = arith.constant 0 : index
    %c0_52 = arith.constant 0 : index
    %88 = vector.load %arg8[%c0_51, %c0_52] : memref<1x64xf32, #tpu.memory_space<vmem>>, vector<1x64xf32>
    %89 = vector.broadcast %88 : vector<1x64xf32> to vector<8x64xf32>
    %90 = arith.addf %87, %89 : vector<8x64xf32>
    %cst_53 = arith.constant 0.000000e+00 : f32
    %91 = vector.broadcast %cst_53 : f32 to vector<8x64xf32>
    %92 = arith.maximumf %90, %91 : vector<8x64xf32>
    %c0_54 = arith.constant 0 : index
    %c0_55 = arith.constant 0 : index
    %93 = vector.load %arg9[%c0_54, %c0_55] : memref<64x32xf32, #tpu.memory_space<vmem>>, vector<64x32xf32>
    %cst_56 = arith.constant dense<0.000000e+00> : vector<8x32xf32>
    %94 = tpu.matmul %92, %93, %cst_56 {dimension_numbers = #tpu.dot_dimension_numbers<[1], [0], [0], [1], [0, 0, 1, 1], [], []>} : vector<8x64xf32>, vector<64x32xf32>, vector<8x32xf32> -> vector<8x32xf32>
    %c0_57 = arith.constant 0 : index
    %c0_58 = arith.constant 0 : index
    %95 = vector.load %arg10[%c0_57, %c0_58] : memref<1x32xf32, #tpu.memory_space<vmem>>, vector<1x32xf32>
    %96 = vector.broadcast %95 : vector<1x32xf32> to vector<8x32xf32>
    %97 = arith.addf %94, %96 : vector<8x32xf32>
    %98 = arith.addf %85, %97 : vector<8x32xf32>
    %c1_59 = arith.constant 1 : index
    %c0_60 = arith.constant 0 : index
    %c0_61 = arith.constant 0 : index
    %99 = vector.load %arg11[%c1_59, %c0_60, %c0_61] : memref<2x1x32xf32, #tpu.memory_space<vmem>>, vector<1x1x32xf32>
    %100 = vector.shape_cast %99 : vector<1x1x32xf32> to vector<1x32xf32>
    %c1_62 = arith.constant 1 : index
    %c0_63 = arith.constant 0 : index
    %c0_64 = arith.constant 0 : index
    %101 = vector.load %arg12[%c1_62, %c0_63, %c0_64] : memref<2x1x32xf32, #tpu.memory_space<vmem>>, vector<1x1x32xf32>
    %102 = vector.shape_cast %101 : vector<1x1x32xf32> to vector<1x32xf32>
    %cst_65 = arith.constant dense<0.000000e+00> : vector<8xf32>
    %103 = vector.multi_reduction <add>, %98, %cst_65 [1] : vector<8x32xf32> to vector<8xf32>
    %104 = vector.shape_cast %103 : vector<8xf32> to vector<8x1xf32>
    %cst_66 = arith.constant 3.200000e+01 : f32
    %105 = vector.broadcast %cst_66 : f32 to vector<8x1xf32>
    %106 = arith.divf %104, %105 : vector<8x1xf32>
    %107 = vector.broadcast %106 : vector<8x1xf32> to vector<8x32xf32>
    %108 = arith.subf %98, %107 : vector<8x32xf32>
    %109 = arith.mulf %108, %108 : vector<8x32xf32>
    %cst_67 = arith.constant dense<0.000000e+00> : vector<8xf32>
    %110 = vector.multi_reduction <add>, %109, %cst_67 [1] : vector<8x32xf32> to vector<8xf32>
    %111 = vector.shape_cast %110 : vector<8xf32> to vector<8x1xf32>
    %cst_68 = arith.constant 3.200000e+01 : f32
    %112 = vector.broadcast %cst_68 : f32 to vector<8x1xf32>
    %113 = arith.divf %111, %112 : vector<8x1xf32>
    %114 = vector.broadcast %106 : vector<8x1xf32> to vector<8x32xf32>
    %115 = arith.subf %98, %114 : vector<8x32xf32>
    %cst_69 = arith.constant 9.99999974E-6 : f32
    %116 = vector.broadcast %cst_69 : f32 to vector<8x1xf32>
    %117 = arith.addf %113, %116 : vector<8x1xf32>
    %118 = math.rsqrt %117 : vector<8x1xf32>
    %119 = vector.broadcast %118 : vector<8x1xf32> to vector<8x32xf32>
    %120 = arith.mulf %115, %119 : vector<8x32xf32>
    %121 = vector.broadcast %100 : vector<1x32xf32> to vector<8x32xf32>
    %122 = arith.mulf %120, %121 : vector<8x32xf32>
    %123 = vector.broadcast %102 : vector<1x32xf32> to vector<8x32xf32>
    %124 = arith.addf %122, %123 : vector<8x32xf32>
    %c0_70 = arith.constant 0 : index
    %c0_71 = arith.constant 0 : index
    %c0_72 = arith.constant 0 : index
    %125 = vector.load %arg13[%c0_70, %c0_71, %c0_72] : memref<1x8x32xf32, #tpu.memory_space<vmem>>, vector<1x8x32xf32>
    %126 = vector.shape_cast %125 : vector<1x8x32xf32> to vector<8x32xf32>
    %127 = vector.shape_cast %124 : vector<8x32xf32> to vector<1x8x32xf32>
    tpu.vector_store %arg13[%c0_70, %c0_71, %c0_72], %127 {strides = array<i32>} : memref<1x8x32xf32, #tpu.memory_space<vmem>>, vector<1x8x32xf32>,
    return
  }
  func.func @transform_0(%arg0: i32, %arg1: i32) -> (i32, i32, i32) {
    %c0_i32 = arith.constant 0 : i32
    %c0_i32_0 = arith.constant 0 : i32
    return %arg0, %arg1, %c0_i32 : i32, i32, i32
  }
  func.func @transform_1(%arg0: i32, %arg1: i32) -> (i32, i32, i32) {
    %c0_i32 = arith.constant 0 : i32
    %c0_i32_0 = arith.constant 0 : i32
    %c0_i32_1 = arith.constant 0 : i32
    return %arg0, %c0_i32, %c0_i32_0 : i32, i32, i32
  }
  func.func @transform_2(%arg0: i32, %arg1: i32) -> (i32, i32, i32) {
    %c0_i32 = arith.constant 0 : i32
    %c0_i32_0 = arith.constant 0 : i32
    return %arg0, %arg1, %c0_i32 : i32, i32, i32
  }
  func.func @transform_3(%arg0: i32, %arg1: i32) -> (i32, i32, i32) {
    %c0_i32 = arith.constant 0 : i32
    %c0_i32_0 = arith.constant 0 : i32
    %c0_i32_1 = arith.constant 0 : i32
    %c0_i32_2 = arith.constant 0 : i32
    return %c0_i32, %c0_i32_0, %c0_i32_1 : i32, i32, i32
  }
  func.func @transform_4(%arg0: i32, %arg1: i32) -> (i32, i32, i32) {
    %c0_i32 = arith.constant 0 : i32
    %c0_i32_0 = arith.constant 0 : i32
    %c0_i32_1 = arith.constant 0 : i32
    %c0_i32_2 = arith.constant 0 : i32
    return %c0_i32, %c0_i32_0, %c0_i32_1 : i32, i32, i32
  }
  func.func @transform_5(%arg0: i32, %arg1: i32) -> (i32, i32) {
    %c0_i32 = arith.constant 0 : i32
    %c0_i32_0 = arith.constant 0 : i32
    %c0_i32_1 = arith.constant 0 : i32
    return %c0_i32, %c0_i32_0 : i32, i32
  }
  func.func @transform_6(%arg0: i32, %arg1: i32) -> (i32, i32) {
    %c0_i32 = arith.constant 0 : i32
    %c0_i32_0 = arith.constant 0 : i32
    %c0_i32_1 = arith.constant 0 : i32
    return %c0_i32, %c0_i32_0 : i32, i32
  }
  func.func @transform_7(%arg0: i32, %arg1: i32) -> (i32, i32) {
    %c0_i32 = arith.constant 0 : i32
    %c0_i32_0 = arith.constant 0 : i32
    %c0_i32_1 = arith.constant 0 : i32
    return %c0_i32, %c0_i32_0 : i32, i32
  }
  func.func @transform_8(%arg0: i32, %arg1: i32) -> (i32, i32) {
    %c0_i32 = arith.constant 0 : i32
    %c0_i32_0 = arith.constant 0 : i32
    %c0_i32_1 = arith.constant 0 : i32
    return %c0_i32, %c0_i32_0 : i32, i32
  }
  func.func @transform_9(%arg0: i32, %arg1: i32) -> (i32, i32, i32) {
    %c0_i32 = arith.constant 0 : i32
    %c0_i32_0 = arith.constant 0 : i32
    %c0_i32_1 = arith.constant 0 : i32
    %c0_i32_2 = arith.constant 0 : i32
    return %c0_i32, %c0_i32_0, %c0_i32_1 : i32, i32, i32
  }
  func.func @transform_10(%arg0: i32, %arg1: i32) -> (i32, i32, i32) {
    %c0_i32 = arith.constant 0 : i32
    %c0_i32_0 = arith.constant 0 : i32
    %c0_i32_1 = arith.constant 0 : i32
    %c0_i32_2 = arith.constant 0 : i32
    return %c0_i32, %c0_i32_0, %c0_i32_1 : i32, i32, i32
  }
  func.func @transform_11(%arg0: i32, %arg1: i32) -> (i32, i32, i32) {
    %c0_i32 = arith.constant 0 : i32
    %c0_i32_0 = arith.constant 0 : i32
    return %arg0, %arg1, %c0_i32 : i32, i32, i32
  }
}

</mosaic_0001>

<llo_original>
// kernel: tpu_custom_call.1
$region0: #{tpu_custom_call.1}
  #allocation0 [shape = 'u32[]', space=smem, size = 0x4, offset = 0x4, fixed_abs, tag = 'smem constant byte address 0x4 - core index']
  #allocation1 [shape = 'u32[144,128]{1,0:T(1,128)}', space=vmem, size = 0x12000, scoped, tag = 'internal scratch']
  %s0 = inlined_call_operand.vmem [shape: f32[2,8,32], index: 0, kind: input, shape index: {}]
  %s1 = inlined_call_operand.vmem [shape: f32[2,8,32], index: 1, kind: input, shape index: {}]
  %s2 = inlined_call_operand.vmem [shape: f32[2,8,8], index: 2, kind: input, shape index: {}]
  %s3 = inlined_call_operand.hbm [shape: f32[4,32,32], index: 3, kind: input, shape index: {}]
  %s4 = inlined_call_operand.vmem [shape: f32[4,1,32], index: 4, kind: input, shape index: {}]
  %s5 = inlined_call_operand.vmem [shape: f32[32,64], index: 5, kind: input, shape index: {}]
  %s6 = inlined_call_operand.vmem [shape: f32[1,64], index: 6, kind: input, shape index: {}]
  %s7 = inlined_call_operand.vmem [shape: f32[64,32], index: 7, kind: input, shape index: {}]
  %s8 = inlined_call_operand.vmem [shape: f32[1,32], index: 8, kind: input, shape index: {}]
  %s9 = inlined_call_operand.vmem [shape: f32[2,1,32], index: 9, kind: input, shape index: {}]
  %s10 = inlined_call_operand.vmem [shape: f32[2,1,32], index: 10, kind: input, shape index: {}]
  %s11 = inlined_call_operand.hbm [shape: f32[2,8,32], index: 11, kind: output, shape index: {}]
  %s12 = sld [smem:[#allocation0]]
  $region81: #{tpu_custom_call.1} parent=0
    _
  %s14 = ssub.s32 1, %s12
  %s15 = scalar_select 0, %s14, %s12
  $region1: #{tpu_custom_call.1} parent=0
    #allocation2 [shape = 'u8[65536]{0}', space=vmem, size = 0x10000, scoped, tag = 'input window, operand 3, single buffered']
    #allocation3 [shape = 's32[2]{0}', space=sflag, size = 0x8, scoped, tag = 'scoped memory for tpu_custom_call.1']
    #allocation4 [shape = 's32[2]{0}', space=sflag, size = 0x8, scoped, tag = 'scoped memory for tpu_custom_call.1']
    #allocation5 [shape = 'u8[8192]{0}', space=vmem, size = 0x2000, scoped, tag = 'output window, operand 0']
    %16 = vsyncpa [#allocation3], 0
    %17 = vsyncpa [#allocation4], 0
    %s18 = scalar_lea.sflag [#allocation4], 1
    %19 = vsyncpa %s18, 0
    loop: start=0, step=1, limit=4
    $region2: #{tpu_custom_call.1} parent=1 // loop_pre_header
      _
    $region3: #{tpu_custom_call.1} parent=1 // loop_header
      %s21 = sphi 0, %s25
      %p22 = scmp.ge.s32.totalorder %s21, 4
      %s28 = sphi 0, %s40
      %s29 = sphi 0, %s36
      %s30 = sphi 0, %s28
      %s31 = sphi 0, %s29
      %s32 = sphi 0, %s30
      %s33 = sphi 0, %s31
      %s45 = sphi 0, %s47
      %s48 = sphi 0, %s45
      %s49 = sphi 0, %s48
      %s65 = sphi 0, %s49
      %s71 = sphi 0, %s73
      %s74 = sphi 0, %s71
      %s75 = sphi 0, %s74
      %s91 = sphi 0, %s75
      %s99 = sphi 0, %s101
      %s102 = sphi 0, %s99
      %s103 = sphi 0, %s102
      %s119 = sphi 0, %s103
      %s123 = sphi 0, %s123
      %s125 = sphi 0, %s123
      %s126 = sphi 0, %s125
      %s140 = sphi 0, %s126
      %s144 = sphi 0, %s144
      %s146 = sphi 0, %s144
      %s147 = sphi 0, %s146
      %s161 = sphi 0, %s147
      %s165 = sphi 0, %s165
      %s167 = sphi 0, %s165
      %s168 = sphi 0, %s167
      %s182 = sphi 0, %s168
      %s186 = sphi 0, %s186
      %s188 = sphi 0, %s186
      %s189 = sphi 0, %s188
      %s203 = sphi 0, %s189
      %s207 = sphi 0, %s207
      %s209 = sphi 0, %s207
      %s210 = sphi 0, %s209
      %s224 = sphi 0, %s210
      %s228 = sphi 0, %s228
      %s230 = sphi 0, %s228
      %s231 = sphi 0, %s230
      %s245 = sphi 0, %s231
      %s249 = sphi 0, %s249
      %s251 = sphi 0, %s249
      %s252 = sphi 0, %s251
      %s266 = sphi 0, %s252
      %s270 = sphi 0, %s270
      %s272 = sphi 0, %s270
      %s273 = sphi 0, %s272
      %s287 = sphi 0, %s273
      %s295 = sphi 0, %s297
      %s298 = sphi 0, %s295
      %s299 = sphi 0, %s298
      %s315 = sphi 0, %s299
    $region4: #{tpu_custom_call.1} parent=1 // loop_header_branch
      %24 = sbr.rel (%p22) target = $region8
    $region5: #{tpu_custom_call.1} parent=1 // loop_body
      %s26 = ssub.s32 %s21, 1
      %s27 = ssub.s32 %s21, 2
      %s34 = sadd.s32 1, %s29
      %p35 = scmp.ge.s32.totalorder %s34, 1
      %s36 = scalar_select %p35, 0, %s34
      %s37 = sadd.s32 1, %s28
      %s38 = scalar_select %p35, %s37, %s28
      %p39 = scmp.ge.s32.totalorder %s38, 2
      %s40 = scalar_select %p39, 0, %s38
      %s41 = ssub.s32 %s28, %s40
      %s42 = ssub.s32 %s29, %s36
      %s43 = sor.u32 %s41, %s42
      %p44 = scmp.eq.s32.totalorder %s43, 0
      %s46 = sadd.s32 %s45, 1
      %s47 = scalar_select %p44, %s45, %s46
      %p50 = pneg %p44
      %p51 = scmp.eq.s32.totalorder %s21, 1
      %p52 = por %p50, %p51
      %p53 = scmp.ne.s32.totalorder %s45, %s48
      %p54 = scmp.eq.s32.totalorder %s21, 0
      %p55 = por %p53, %p54
      %p56 = scmp.ne.s32.totalorder %s45, %s48
      %p57 = scmp.eq.s32.totalorder %s26, 1
      %p58 = por %p56, %p57
      %p59 = scmp.ne.s32.totalorder %s48, %s49
      %p60 = scmp.eq.s32.totalorder %s26, 0
      %p61 = por %p59, %p60
      %p62 = scmp.ne.s32.totalorder %s48, %s49
      %p63 = scmp.eq.s32.totalorder %s27, 1
      %p64 = por %p62, %p63
      %p66 = scmp.ne.s32.totalorder %s49, %s65
      %p67 = scmp.eq.s32.totalorder %s27, 0
      %p68 = por %p66, %p67
      %s69 = ssub.s32 %s28, %s40
      %p70 = scmp.eq.s32.totalorder %s69, 0
      %s72 = sadd.s32 %s71, 1
      %s73 = scalar_select %p70, %s71, %s72
      %p76 = pneg %p70
      %p77 = scmp.eq.s32.totalorder %s21, 1
      %p78 = por %p76, %p77
      %p79 = scmp.ne.s32.totalorder %s71, %s74
      %p80 = scmp.eq.s32.totalorder %s21, 0
      %p81 = por %p79, %p80
      %p82 = scmp.ne.s32.totalorder %s71, %s74
      %p83 = scmp.eq.s32.totalorder %s26, 1
      %p84 = por %p82, %p83
      %p85 = scmp.ne.s32.totalorder %s74, %s75
      %p86 = scmp.eq.s32.totalorder %s26, 0
      %p87 = por %p85, %p86
      %p88 = scmp.ne.s32.totalorder %s74, %s75
      %p89 = scmp.eq.s32.totalorder %s27, 1
      %p90 = por %p88, %p89
      %p92 = scmp.ne.s32.totalorder %s75, %s91
      %p93 = scmp.eq.s32.totalorder %s27, 0
      %p94 = por %p92, %p93
      %s95 = ssub.s32 %s28, %s40
      %s96 = ssub.s32 %s29, %s36
      %s97 = sor.u32 %s95, %s96
      %p98 = scmp.eq.s32.totalorder %s97, 0
      %s100 = sadd.s32 %s99, 1
      %s101 = scalar_select %p98, %s99, %s100
      %p104 = pneg %p98
      %p105 = scmp.eq.s32.totalorder %s21, 1
      %p106 = por %p104, %p105
      %p107 = scmp.ne.s32.totalorder %s99, %s102
      %p108 = scmp.eq.s32.totalorder %s21, 0
      %p109 = por %p107, %p108
      %p110 = scmp.ne.s32.totalorder %s99, %s102
      %p111 = scmp.eq.s32.totalorder %s26, 1
      %p112 = por %p110, %p111
      %p113 = scmp.ne.s32.totalorder %s102, %s103
      %p114 = scmp.eq.s32.totalorder %s26, 0
      %p115 = por %p113, %p114
      %p116 = scmp.ne.s32.totalorder %s102, %s103
      %p117 = scmp.eq.s32.totalorder %s27, 1
      %p118 = por %p116, %p117
      %p120 = scmp.ne.s32.totalorder %s103, %s119
      %p121 = scmp.eq.s32.totalorder %s27, 0
      %p122 = por %p120, %p121
      %s124 = sadd.s32 %s123, 1
      %p127 = scmp.eq.s32.totalorder %s21, 1
      %p128 = scmp.ne.s32.totalorder %s123, %s125
      %p129 = scmp.eq.s32.totalorder %s21, 0
      %p130 = por %p128, %p129
      %p131 = scmp.ne.s32.totalorder %s123, %s125
      %p132 = scmp.eq.s32.totalorder %s26, 1
      %p133 = por %p131, %p132
      %p134 = scmp.ne.s32.totalorder %s125, %s126
      %p135 = scmp.eq.s32.totalorder %s26, 0
      %p136 = por %p134, %p135
      %p137 = scmp.ne.s32.totalorder %s125, %s126
      %p138 = scmp.eq.s32.totalorder %s27, 1
      %p139 = por %p137, %p138
      %p141 = scmp.ne.s32.totalorder %s126, %s140
      %p142 = scmp.eq.s32.totalorder %s27, 0
      %p143 = por %p141, %p142
      %s145 = sadd.s32 %s144, 1
      %p148 = scmp.eq.s32.totalorder %s21, 1
      %p149 = scmp.ne.s32.totalorder %s144, %s146
      %p150 = scmp.eq.s32.totalorder %s21, 0
      %p151 = por %p149, %p150
      %p152 = scmp.ne.s32.totalorder %s144, %s146
      %p153 = scmp.eq.s32.totalorder %s26, 1
      %p154 = por %p152, %p153
      %p155 = scmp.ne.s32.totalorder %s146, %s147
      %p156 = scmp.eq.s32.totalorder %s26, 0
      %p157 = por %p155, %p156
      %p158 = scmp.ne.s32.totalorder %s146, %s147
      %p159 = scmp.eq.s32.totalorder %s27, 1
      %p160 = por %p158, %p159
      %p162 = scmp.ne.s32.totalorder %s147, %s161
      %p163 = scmp.eq.s32.totalorder %s27, 0
      %p164 = por %p162, %p163
      %s166 = sadd.s32 %s165, 1
      %p169 = scmp.eq.s32.totalorder %s21, 1
      %p170 = scmp.ne.s32.totalorder %s165, %s167
      %p171 = scmp.eq.s32.totalorder %s21, 0
      %p172 = por %p170, %p171
      %p173 = scmp.ne.s32.totalorder %s165, %s167
      %p174 = scmp.eq.s32.totalorder %s26, 1
      %p175 = por %p173, %p174
      %p176 = scmp.ne.s32.totalorder %s167, %s168
      %p177 = scmp.eq.s32.totalorder %s26, 0
      %p178 = por %p176, %p177
      %p179 = scmp.ne.s32.totalorder %s167, %s168
      %p180 = scmp.eq.s32.totalorder %s27, 1
      %p181 = por %p179, %p180
      %p183 = scmp.ne.s32.totalorder %s168, %s182
      %p184 = scmp.eq.s32.totalorder %s27, 0
      %p185 = por %p183, %p184
      %s187 = sadd.s32 %s186, 1
      %p190 = scmp.eq.s32.totalorder %s21, 1
      %p191 = scmp.ne.s32.totalorder %s186, %s188
      %p192 = scmp.eq.s32.totalorder %s21, 0
      %p193 = por %p191, %p192
      %p194 = scmp.ne.s32.totalorder %s186, %s188
      %p195 = scmp.eq.s32.totalorder %s26, 1
      %p196 = por %p194, %p195
      %p197 = scmp.ne.s32.totalorder %s188, %s189
      %p198 = scmp.eq.s32.totalorder %s26, 0
      %p199 = por %p197, %p198
      %p200 = scmp.ne.s32.totalorder %s188, %s189
      %p201 = scmp.eq.s32.totalorder %s27, 1
      %p202 = por %p200, %p201
      %p204 = scmp.ne.s32.totalorder %s189, %s203
      %p205 = scmp.eq.s32.totalorder %s27, 0
      %p206 = por %p204, %p205
      %s208 = sadd.s32 %s207, 1
      %p211 = scmp.eq.s32.totalorder %s21, 1
      %p212 = scmp.ne.s32.totalorder %s207, %s209
      %p213 = scmp.eq.s32.totalorder %s21, 0
      %p214 = por %p212, %p213
      %p215 = scmp.ne.s32.totalorder %s207, %s209
      %p216 = scmp.eq.s32.totalorder %s26, 1
      %p217 = por %p215, %p216
      %p218 = scmp.ne.s32.totalorder %s209, %s210
      %p219 = scmp.eq.s32.totalorder %s26, 0
      %p220 = por %p218, %p219
      %p221 = scmp.ne.s32.totalorder %s209, %s210
      %p222 = scmp.eq.s32.totalorder %s27, 1
      %p223 = por %p221, %p222
      %p225 = scmp.ne.s32.totalorder %s210, %s224
      %p226 = scmp.eq.s32.totalorder %s27, 0
      %p227 = por %p225, %p226
      %s229 = sadd.s32 %s228, 1
      %p232 = scmp.eq.s32.totalorder %s21, 1
      %p233 = scmp.ne.s32.totalorder %s228, %s230
      %p234 = scmp.eq.s32.totalorder %s21, 0
      %p235 = por %p233, %p234
      %p236 = scmp.ne.s32.totalorder %s228, %s230
      %p237 = scmp.eq.s32.totalorder %s26, 1
      %p238 = por %p236, %p237
      %p239 = scmp.ne.s32.totalorder %s230, %s231
      %p240 = scmp.eq.s32.totalorder %s26, 0
      %p241 = por %p239, %p240
      %p242 = scmp.ne.s32.totalorder %s230, %s231
      %p243 = scmp.eq.s32.totalorder %s27, 1
      %p244 = por %p242, %p243
      %p246 = scmp.ne.s32.totalorder %s231, %s245
      %p247 = scmp.eq.s32.totalorder %s27, 0
      %p248 = por %p246, %p247
      %s250 = sadd.s32 %s249, 1
      %p253 = scmp.eq.s32.totalorder %s21, 1
      %p254 = scmp.ne.s32.totalorder %s249, %s251
      %p255 = scmp.eq.s32.totalorder %s21, 0
      %p256 = por %p254, %p255
      %p257 = scmp.ne.s32.totalorder %s249, %s251
      %p258 = scmp.eq.s32.totalorder %s26, 1
      %p259 = por %p257, %p258
      %p260 = scmp.ne.s32.totalorder %s251, %s252
      %p261 = scmp.eq.s32.totalorder %s26, 0
      %p262 = por %p260, %p261
      %p263 = scmp.ne.s32.totalorder %s251, %s252
      %p264 = scmp.eq.s32.totalorder %s27, 1
      %p265 = por %p263, %p264
      %p267 = scmp.ne.s32.totalorder %s252, %s266
      %p268 = scmp.eq.s32.totalorder %s27, 0
      %p269 = por %p267, %p268
      %s271 = sadd.s32 %s270, 1
      %p274 = scmp.eq.s32.totalorder %s21, 1
      %p275 = scmp.ne.s32.totalorder %s270, %s272
      %p276 = scmp.eq.s32.totalorder %s21, 0
      %p277 = por %p275, %p276
      %p278 = scmp.ne.s32.totalorder %s270, %s272
      %p279 = scmp.eq.s32.totalorder %s26, 1
      %p280 = por %p278, %p279
      %p281 = scmp.ne.s32.totalorder %s272, %s273
      %p282 = scmp.eq.s32.totalorder %s26, 0
      %p283 = por %p281, %p282
      %p284 = scmp.ne.s32.totalorder %s272, %s273
      %p285 = scmp.eq.s32.totalorder %s27, 1
      %p286 = por %p284, %p285
      %p288 = scmp.ne.s32.totalorder %s273, %s287
      %p289 = scmp.eq.s32.totalorder %s27, 0
      %p290 = por %p288, %p289
      %s291 = ssub.s32 %s28, %s40
      %s292 = ssub.s32 %s29, %s36
      %s293 = sor.u32 %s291, %s292
      %p294 = scmp.eq.s32.totalorder %s293, 0
      %s296 = sadd.s32 %s295, 1
      %s297 = scalar_select %p294, %s295, %s296
      %p300 = pneg %p294
      %p301 = scmp.eq.s32.totalorder %s21, 1
      %p302 = por %p300, %p301
      %p303 = scmp.ne.s32.totalorder %s295, %s298
      %p304 = scmp.eq.s32.totalorder %s21, 0
      %p305 = por %p303, %p304
      %p306 = scmp.ne.s32.totalorder %s295, %s298
      %p307 = scmp.eq.s32.totalorder %s26, 1
      %p308 = por %p306, %p307
      %p309 = scmp.ne.s32.totalorder %s298, %s299
      %p310 = scmp.eq.s32.totalorder %s26, 0
      %p311 = por %p309, %p310
      %p312 = scmp.ne.s32.totalorder %s298, %s299
      %p313 = scmp.eq.s32.totalorder %s27, 1
      %p314 = por %p312, %p313
      %p316 = scmp.ne.s32.totalorder %s299, %s315
      %p317 = scmp.eq.s32.totalorder %s27, 0
      %p318 = por %p316, %p317
      %p319 = scmp.le.s32.totalorder 1, %s21
      %p320 = scmp.lt.s32.totalorder %s21, 3
      %p321 = pnand %p319, %p320
      %p322 = pneg %p321
      // Predicated region
      $region9: #{tpu_custom_call.1} parent=5 // pred_check
        _
      $region10: #{tpu_custom_call.1} parent=5 // pred_check_branch
        %324 = sbr.rel (%p321) target = $region12
      $region11: #{tpu_custom_call.1} parent=5 // pred_region
        %s325 = ssub.s32 %s21, 1
        // Predicated region
        $region13: #{tpu_custom_call.1} parent=11 // pred_check
          %p326 = pneg %p136
        $region14: #{tpu_custom_call.1} parent=11 // pred_check_branch
          %328 = sbr.rel (%p326) target = $region16
        $region15: #{tpu_custom_call.1} parent=11 // pred_region
          %s330 = ssub.s32 2048, 2048
          %331 = vsyncadd [#allocation3], %s330
          %s332 = sshll.u32 [#allocation2], 4
          %s333 = int_to_ptr.vmem [resolvable:$true] %s332
          %338 = dma.hbm_to_vmem [thread:$0]  %s3, 2048, %s333, [#allocation3], 128, 128, 8
        $region16: #{tpu_custom_call.1} parent=11 // pred_fallthru
          _
        // Predicated region
        $region17: #{tpu_custom_call.1} parent=11 // pred_check
          %p339 = pneg %p157
        $region18: #{tpu_custom_call.1} parent=11 // pred_check_branch
          %341 = sbr.rel (%p339) target = $region20
        $region19: #{tpu_custom_call.1} parent=11 // pred_region
          _
        $region20: #{tpu_custom_call.1} parent=11 // pred_fallthru
          _
        // Predicated region
        $region21: #{tpu_custom_call.1} parent=11 // pred_check
          %p342 = pneg %p178
        $region22: #{tpu_custom_call.1} parent=11 // pred_check_branch
          %344 = sbr.rel (%p342) target = $region24
        $region23: #{tpu_custom_call.1} parent=11 // pred_region
          _
        $region24: #{tpu_custom_call.1} parent=11 // pred_fallthru
          _
        // Predicated region
        $region25: #{tpu_custom_call.1} parent=11 // pred_check
          %p345 = pneg %p199
        $region26: #{tpu_custom_call.1} parent=11 // pred_check_branch
          %347 = sbr.rel (%p345) target = $region28
        $region27: #{tpu_custom_call.1} parent=11 // pred_region
          _
        $region28: #{tpu_custom_call.1} parent=11 // pred_fallthru
          _
        // Predicated region
        $region29: #{tpu_custom_call.1} parent=11 // pred_check
          %p348 = pneg %p220
        $region30: #{tpu_custom_call.1} parent=11 // pred_check_branch
          %350 = sbr.rel (%p348) target = $region32
        $region31: #{tpu_custom_call.1} parent=11 // pred_region
          _
        $region32: #{tpu_custom_call.1} parent=11 // pred_fallthru
          _
        // Predicated region
        $region33: #{tpu_custom_call.1} parent=11 // pred_check
          %p351 = pneg %p241
        $region34: #{tpu_custom_call.1} parent=11 // pred_check_branch
          %353 = sbr.rel (%p351) target = $region36
        $region35: #{tpu_custom_call.1} parent=11 // pred_region
          _
        $region36: #{tpu_custom_call.1} parent=11 // pred_fallthru
          _
        // Predicated region
        $region37: #{tpu_custom_call.1} parent=11 // pred_check
          %p354 = pneg %p262
        $region38: #{tpu_custom_call.1} parent=11 // pred_check_branch
          %356 = sbr.rel (%p354) target = $region40
        $region39: #{tpu_custom_call.1} parent=11 // pred_region
          _
        $region40: #{tpu_custom_call.1} parent=11 // pred_fallthru
          _
        // Predicated region
        $region41: #{tpu_custom_call.1} parent=11 // pred_check
          %p357 = pneg %p283
        $region42: #{tpu_custom_call.1} parent=11 // pred_check_branch
          %359 = sbr.rel (%p357) target = $region44
        $region43: #{tpu_custom_call.1} parent=11 // pred_region
          _
        $region44: #{tpu_custom_call.1} parent=11 // pred_fallthru
          _
      $region12: #{tpu_custom_call.1} parent=5 // pred_fallthru
        _
      %p360 = scmp.lt.s32.totalorder %s21, 2
      // Predicated region
      $region45: #{tpu_custom_call.1} parent=5 // pred_check
        %p361 = pneg %p360
      $region46: #{tpu_custom_call.1} parent=5 // pred_check_branch
        %363 = sbr.rel (%p361) target = $region48
      $region47: #{tpu_custom_call.1} parent=5 // pred_region
        // Predicated region
        $region49: #{tpu_custom_call.1} parent=47 // pred_check
          %p364 = pneg %p55
        $region50: #{tpu_custom_call.1} parent=47 // pred_check_branch
          %366 = sbr.rel (%p364) target = $region52
        $region51: #{tpu_custom_call.1} parent=47 // pred_region
          %p367 = scmp.lt.s32.totalorder %s28, 1
          %s368 = scalar_select %p367, %s28, 1
          %p369 = scmp.lt.s32.totalorder %s29, 0
          %s370 = scalar_select %p369, %s29, 0
          %s371 = sadd.s32 %s370, %s368
          %s372 = smul.addr %s371, 8
          %s373 = scalar_lea.vmem %s0, %s372
        $region52: #{tpu_custom_call.1} parent=47 // pred_fallthru
          _
        // Predicated region
        $region53: #{tpu_custom_call.1} parent=47 // pred_check
          %p374 = pneg %p81
        $region54: #{tpu_custom_call.1} parent=47 // pred_check_branch
          %376 = sbr.rel (%p374) target = $region56
        $region55: #{tpu_custom_call.1} parent=47 // pred_region
          %p377 = scmp.lt.s32.totalorder %s28, 1
          %s378 = scalar_select %p377, %s28, 1
          %s379 = smul.addr %s378, 8
          %s380 = scalar_lea.vmem %s1, %s379
        $region56: #{tpu_custom_call.1} parent=47 // pred_fallthru
          _
        // Predicated region
        $region57: #{tpu_custom_call.1} parent=47 // pred_check
          %p381 = pneg %p109
        $region58: #{tpu_custom_call.1} parent=47 // pred_check_branch
          %383 = sbr.rel (%p381) target = $region60
        $region59: #{tpu_custom_call.1} parent=47 // pred_region
          %p384 = scmp.lt.s32.totalorder %s28, 1
          %s385 = scalar_select %p384, %s28, 1
          %p386 = scmp.lt.s32.totalorder %s29, 0
          %s387 = scalar_select %p386, %s29, 0
          %s388 = sadd.s32 %s387, %s385
          %s389 = smul.addr %s388, 8
          %s390 = scalar_lea.vmem %s2, %s389
        $region60: #{tpu_custom_call.1} parent=47 // pred_fallthru
          _
      $region48: #{tpu_custom_call.1} parent=5 // pred_fallthru
        _
      %p391 = scmp.le.s32.totalorder 1, %s21
      %p392 = scmp.lt.s32.totalorder %s21, 3
      %p393 = pnand %p391, %p392
      %p394 = pneg %p393
      // Predicated region
      $region61: #{tpu_custom_call.1} parent=5 // pred_check
        _
      $region62: #{tpu_custom_call.1} parent=5 // pred_check_branch
        %396 = sbr.rel (%p393) target = $region64
      $region63: #{tpu_custom_call.1} parent=5 // pred_region
        %s397 = ssub.s32 %s21, 1
        // Predicated region
        $region65: #{tpu_custom_call.1} parent=63 // pred_check
          %p398 = pneg %p136
        $region66: #{tpu_custom_call.1} parent=63 // pred_check_branch
          %400 = sbr.rel (%p398) target = $region68
        $region67: #{tpu_custom_call.1} parent=63 // pred_region
          %401 = dma.done [#allocation3], 2048
        $region68: #{tpu_custom_call.1} parent=63 // pred_fallthru
          _
        %p402 = scmp.lt.s32.totalorder %s30, 1
        %s403 = scalar_select %p402, %s30, 1
        %p404 = scmp.lt.s32.totalorder %s31, 0
        %s405 = scalar_select %p404, %s31, 0
        %s406 = sadd.s32 %s405, %s403
        %s407 = smul.addr %s406, 8
        %s408 = scalar_lea.vmem %s0, %s407
        %p409 = pneg %p61
        %p410 = pneg %p58
        %p411 = scmp.lt.s32.totalorder %s30, 1
        %s412 = scalar_select %p411, %s30, 1
        %s413 = smul.addr %s412, 8
        %s414 = scalar_lea.vmem %s1, %s413
        %p415 = pneg %p87
        %p416 = pneg %p84
        %p417 = scmp.lt.s32.totalorder %s30, 1
        %s418 = scalar_select %p417, %s30, 1
        %p419 = scmp.lt.s32.totalorder %s31, 0
        %s420 = scalar_select %p419, %s31, 0
        %s421 = sadd.s32 %s420, %s418
        %s422 = smul.addr %s421, 8
        %s423 = scalar_lea.vmem %s2, %s422
        %p424 = pneg %p115
        %p425 = pneg %p112
        %p426 = pneg %p136
        %p427 = pneg %p133
        %p428 = pneg %p157
        %p429 = pneg %p154
        %p430 = pneg %p178
        %p431 = pneg %p175
        %p432 = pneg %p199
        %p433 = pneg %p196
        %p434 = pneg %p220
        %p435 = pneg %p217
        %p436 = pneg %p241
        %p437 = pneg %p238
        %p438 = pneg %p262
        %p439 = pneg %p259
        %p440 = pneg %p283
        %p441 = pneg %p280
        %p442 = pneg %p311
        %p443 = pneg %p308
        %s444 = sand.u32 %s298, 1
        %s445 = scalar_lea.sflag [#allocation4], %s444
        %s446 = sand.u32 %s298, 1
        %s447 = smul.addr %s446, 8
        %s448 = scalar_lea.vmem [#allocation5], %s447
        %p449 = scmp.lt.s32.totalorder %s30, 1
        %s450 = scalar_select %p449, %s30, 1
        %p451 = scmp.lt.s32.totalorder %s31, 0
        %s452 = scalar_select %p451, %s31, 0
        %s453 = sadd.s32 %s452, %s450
        %s454 = smul.addr %s453, 8
        %s455 = scalar_lea.vmem %s0, %s454
        %p456 = scmp.lt.s32.totalorder %s30, 1
        %s457 = scalar_select %p456, %s30, 1
        %s458 = smul.addr %s457, 8
        %s459 = scalar_lea.vmem %s1, %s458
        %p460 = scmp.lt.s32.totalorder %s30, 1
        %s461 = scalar_select %p460, %s30, 1
        %p462 = scmp.lt.s32.totalorder %s31, 0
        %s463 = scalar_select %p462, %s31, 0
        %s464 = sadd.s32 %s463, %s461
        %s465 = smul.addr %s464, 8
        %s466 = scalar_lea.vmem %s2, %s465
        %v467 = vld [vmem:[%s455] sm:$0xff]
        %v468 = vld [vmem:[%s459] sm:$0xff]
        %v469 = vld [vmem:[#allocation2] sm:$0xff]
        %v470 = vld [vmem:[#allocation2 + $0x8] sm:$0xff]
        %v471 = vld [vmem:[#allocation2 + $0x10] sm:$0xff]
        %v472 = vld [vmem:[#allocation2 + $0x18] sm:$0xff]
        %v473 = vld [vmem:[%s4] sm:$0x1]
        %v475 = vlaneseq
        %v476 = vshrl.u32 %v475, 7
        %v477 = vsub.s32 0, %v476
        %v478 = vrot.slane %v473, %v477
        %vm480 = vcmask 261120
        %v482 = vsel %vm480, %v467, 0
        %484 = vmatprep.subr.mxu0 0.0
        %485 = vmatpush1.msra.mxu0 %v469
        %486 = vmatprep.subr.mxu0 0.0
        %487 = vmatpush1.msra.mxu0 %v470
        %488 = vmatprep.subr.mxu0 0.0
        %489 = vmatpush1.msra.mxu0 %v471
        %490 = vmatprep.subr.mxu0 0.0
        %491 = vmatpush1.msra.mxu0 %v472
        %492 = vmatprep.subr.mxu0 0.0
        %493 = vmatpush1.msra.mxu0 0.0
        %494 = vmatprep.subr.mxu0 0.0
        %495 = vmatpush1.msra.mxu0 0.0
        %496 = vmatprep.subr.mxu0 0.0
        %497 = vmatpush1.msra.mxu0 0.0
        %498 = vmatprep.subr.mxu0 0.0
        %499 = vmatpush1.msra.mxu0 0.0
        %500 = vmatprep.subr.mxu0 0.0
        %501 = vmatpush1.msra.mxu0 0.0
        %502 = vmatprep.subr.mxu0 0.0
        %503 = vmatpush1.msra.mxu0 0.0
        %504 = vmatprep.subr.mxu0 0.0
        %505 = vmatpush1.msra.mxu0 0.0
        %506 = vmatprep.subr.mxu0 0.0
        %507 = vmatpush1.msra.mxu0 0.0
        %508 = vmatprep.subr.mxu0 0.0
        %509 = vmatpush1.msra.mxu0 0.0
        %510 = vmatprep.subr.mxu0 0.0
        %511 = vmatpush1.msra.mxu0 0.0
        %512 = vmatprep.subr.mxu0 0.0
        %513 = vmatpush1.msra.mxu0 0.0
        %514 = vmatprep.subr.mxu0 0.0
        %515 = vmatpush1.msra.mxu0 0.0
        %516 = vmatprep.subr.mxu0 0.0
        %517 = vmatpush1.msra.mxu0 0.0
        %518 = vmatprep.subr.mxu0 0.0
        %519 = vmatpush1.msra.mxu0 0.0
        %520 = vmatprep.subr.mxu0 0.0
        %521 = vmatpush1.msra.mxu0 0.0
        %522 = vmatprep.subr.mxu0 0.0
        %523 = vmatpush1.msra.mxu0 0.0
        %524 = vmatprep.subr.mxu0 0.0
        %525 = vmatpush1.msra.mxu0 0.0
        %526 = vmatprep.subr.mxu0 0.0
        %527 = vmatpush1.msra.mxu0 0.0
        %528 = vmatprep.subr.mxu0 0.0
        %529 = vmatpush1.msra.mxu0 0.0
        %530 = vmatprep.subr.mxu0 0.0
        %531 = vmatpush1.msra.mxu0 0.0
        %532 = vmatprep.subr.mxu0 0.0
        %533 = vmatpush1.msra.mxu0 0.0
        %534 = vmatprep.subr.mxu0 0.0
        %535 = vmatpush1.msra.mxu0 0.0
        %536 = vmatprep.subr.mxu0 0.0
        %537 = vmatpush1.msra.mxu0 0.0
        %538 = vmatprep.subr.mxu0 0.0
        %539 = vmatpush1.msra.mxu0 0.0
        %540 = vmatprep.subr.mxu0 0.0
        %541 = vmatpush1.msra.mxu0 0.0
        %542 = vmatprep.subr.mxu0 0.0
        %543 = vmatpush1.msra.mxu0 0.0
        %544 = vmatprep.subr.mxu0 0.0
        %545 = vmatpush1.msra.mxu0 0.0
        %546 = vmatprep.subr.mxu0 0.0
        %547 = vmatpush1.msra.mxu0 0.0
        %548 = vmatprep.mubr.f32.mxu0 0.0
        %549 = vmatmul.mubr.f32.gmra.mrb[0].mxu0 %v482
        %v550 = vpop.f32.mrb[0].mxu0
        %v551 = vadd.f32 %v478, %v550
        %v552 = vpop.f32.mrb[0].mxu0
        %553 = vdwg.mxu0
        %s554 = scalar_lea.vmem [#allocation2], 32
        %v555 = vld [vmem:[%s554] sm:$0xff]
        %v556 = vld [vmem:[%s554 + $0x8] sm:$0xff]
        %v557 = vld [vmem:[%s554 + $0x10] sm:$0xff]
        %v558 = vld [vmem:[%s554 + $0x18] sm:$0xff]
        %s559 = scalar_lea.vmem %s4, 1
        %v560 = vld [vmem:[%s559] sm:$0x1]
        %v562 = vlaneseq
        %v563 = vshrl.u32 %v562, 7
        %v564 = vsub.s32 0, %v563
        %v565 = vrot.slane %v560, %v564
        %v568 = vsel %vm480, %v468, 0
        %570 = vmatprep.subr.mxu0 0.0
        %571 = vmatpush1.msra.mxu0 %v555
        %572 = vmatprep.subr.mxu0 0.0
        %573 = vmatpush1.msra.mxu0 %v556
        %574 = vmatprep.subr.mxu0 0.0
        %575 = vmatpush1.msra.mxu0 %v557
        %576 = vmatprep.subr.mxu0 0.0
        %577 = vmatpush1.msra.mxu0 %v558
        %578 = vmatprep.subr.mxu0 0.0
        %579 = vmatpush1.msra.mxu0 0.0
        %580 = vmatprep.subr.mxu0 0.0
        %581 = vmatpush1.msra.mxu0 0.0
        %582 = vmatprep.subr.mxu0 0.0
        %583 = vmatpush1.msra.mxu0 0.0
        %584 = vmatprep.subr.mxu0 0.0
        %585 = vmatpush1.msra.mxu0 0.0
        %586 = vmatprep.subr.mxu0 0.0
        %587 = vmatpush1.msra.mxu0 0.0
        %588 = vmatprep.subr.mxu0 0.0
        %589 = vmatpush1.msra.mxu0 0.0
        %590 = vmatprep.subr.mxu0 0.0
        %591 = vmatpush1.msra.mxu0 0.0
        %592 = vmatprep.subr.mxu0 0.0
        %593 = vmatpush1.msra.mxu0 0.0
        %594 = vmatprep.subr.mxu0 0.0
        %595 = vmatpush1.msra.mxu0 0.0
        %596 = vmatprep.subr.mxu0 0.0
        %597 = vmatpush1.msra.mxu0 0.0
        %598 = vmatprep.subr.mxu0 0.0
        %599 = vmatpush1.msra.mxu0 0.0
        %600 = vmatprep.subr.mxu0 0.0
        %601 = vmatpush1.msra.mxu0 0.0
        %602 = vmatprep.subr.mxu0 0.0
        %603 = vmatpush1.msra.mxu0 0.0
        %604 = vmatprep.subr.mxu0 0.0
        %605 = vmatpush1.msra.mxu0 0.0
        %606 = vmatprep.subr.mxu0 0.0
        %607 = vmatpush1.msra.mxu0 0.0
        %608 = vmatprep.subr.mxu0 0.0
        %609 = vmatpush1.msra.mxu0 0.0
        %610 = vmatprep.subr.mxu0 0.0
        %611 = vmatpush1.msra.mxu0 0.0
        %612 = vmatprep.subr.mxu0 0.0
        %613 = vmatpush1.msra.mxu0 0.0
        %614 = vmatprep.subr.mxu0 0.0
        %615 = vmatpush1.msra.mxu0 0.0
        %616 = vmatprep.subr.mxu0 0.0
        %617 = vmatpush1.msra.mxu0 0.0
        %618 = vmatprep.subr.mxu0 0.0
        %619 = vmatpush1.msra.mxu0 0.0
        %620 = vmatprep.subr.mxu0 0.0
        %621 = vmatpush1.msra.mxu0 0.0
        %622 = vmatprep.subr.mxu0 0.0
        %623 = vmatpush1.msra.mxu0 0.0
        %624 = vmatprep.subr.mxu0 0.0
        %625 = vmatpush1.msra.mxu0 0.0
        %626 = vmatprep.subr.mxu0 0.0
        %627 = vmatpush1.msra.mxu0 0.0
        %628 = vmatprep.subr.mxu0 0.0
        %629 = vmatpush1.msra.mxu0 0.0
        %630 = vmatprep.subr.mxu0 0.0
        %631 = vmatpush1.msra.mxu0 0.0
        %632 = vmatprep.subr.mxu0 0.0
        %633 = vmatpush1.msra.mxu0 0.0
        %634 = vmatprep.mubr.f32.mxu0 0.0
        %635 = vmatmul.mubr.f32.gmra.mrb[0].mxu0 %v568
        %v636 = vpop.f32.mrb[0].mxu0
        %v637 = vadd.f32 %v565, %v636
        %v638 = vpop.f32.mrb[0].mxu0
        %639 = vdwg.mxu0
        %s640 = scalar_lea.vmem [#allocation2], 64
        %v641 = vld [vmem:[%s640] sm:$0xff]
        %v642 = vld [vmem:[%s640 + $0x8] sm:$0xff]
        %v643 = vld [vmem:[%s640 + $0x10] sm:$0xff]
        %v644 = vld [vmem:[%s640 + $0x18] sm:$0xff]
        %s645 = scalar_lea.vmem %s4, 2
        %v646 = vld [vmem:[%s645] sm:$0x1]
        %v648 = vlaneseq
        %v649 = vshrl.u32 %v648, 7
        %v650 = vsub.s32 0, %v649
        %v651 = vrot.slane %v646, %v650
        %653 = vmatprep.subr.mxu0 0.0
        %654 = vmatpush1.msra.mxu0 %v641
        %655 = vmatprep.subr.mxu0 0.0
        %656 = vmatpush1.msra.mxu0 %v642
        %657 = vmatprep.subr.mxu0 0.0
        %658 = vmatpush1.msra.mxu0 %v643
        %659 = vmatprep.subr.mxu0 0.0
        %660 = vmatpush1.msra.mxu0 %v644
        %661 = vmatprep.subr.mxu0 0.0
        %662 = vmatpush1.msra.mxu0 0.0
        %663 = vmatprep.subr.mxu0 0.0
        %664 = vmatpush1.msra.mxu0 0.0
        %665 = vmatprep.subr.mxu0 0.0
        %666 = vmatpush1.msra.mxu0 0.0
        %667 = vmatprep.subr.mxu0 0.0
        %668 = vmatpush1.msra.mxu0 0.0
        %669 = vmatprep.subr.mxu0 0.0
        %670 = vmatpush1.msra.mxu0 0.0
        %671 = vmatprep.subr.mxu0 0.0
        %672 = vmatpush1.msra.mxu0 0.0
        %673 = vmatprep.subr.mxu0 0.0
        %674 = vmatpush1.msra.mxu0 0.0
        %675 = vmatprep.subr.mxu0 0.0
        %676 = vmatpush1.msra.mxu0 0.0
        %677 = vmatprep.subr.mxu0 0.0
        %678 = vmatpush1.msra.mxu0 0.0
        %679 = vmatprep.subr.mxu0 0.0
        %680 = vmatpush1.msra.mxu0 0.0
        %681 = vmatprep.subr.mxu0 0.0
        %682 = vmatpush1.msra.mxu0 0.0
        %683 = vmatprep.subr.mxu0 0.0
        %684 = vmatpush1.msra.mxu0 0.0
        %685 = vmatprep.subr.mxu0 0.0
        %686 = vmatpush1.msra.mxu0 0.0
        %687 = vmatprep.subr.mxu0 0.0
        %688 = vmatpush1.msra.mxu0 0.0
        %689 = vmatprep.subr.mxu0 0.0
        %690 = vmatpush1.msra.mxu0 0.0
        %691 = vmatprep.subr.mxu0 0.0
        %692 = vmatpush1.msra.mxu0 0.0
        %693 = vmatprep.subr.mxu0 0.0
        %694 = vmatpush1.msra.mxu0 0.0
        %695 = vmatprep.subr.mxu0 0.0
        %696 = vmatpush1.msra.mxu0 0.0
        %697 = vmatprep.subr.mxu0 0.0
        %698 = vmatpush1.msra.mxu0 0.0
        %699 = vmatprep.subr.mxu0 0.0
        %700 = vmatpush1.msra.mxu0 0.0
        %701 = vmatprep.subr.mxu0 0.0
        %702 = vmatpush1.msra.mxu0 0.0
        %703 = vmatprep.subr.mxu0 0.0
        %704 = vmatpush1.msra.mxu0 0.0
        %705 = vmatprep.subr.mxu0 0.0
        %706 = vmatpush1.msra.mxu0 0.0
        %707 = vmatprep.subr.mxu0 0.0
        %708 = vmatpush1.msra.mxu0 0.0
        %709 = vmatprep.subr.mxu0 0.0
        %710 = vmatpush1.msra.mxu0 0.0
        %711 = vmatprep.subr.mxu0 0.0
        %712 = vmatpush1.msra.mxu0 0.0
        %713 = vmatprep.subr.mxu0 0.0
        %714 = vmatpush1.msra.mxu0 0.0
        %715 = vmatprep.subr.mxu0 0.0
        %716 = vmatpush1.msra.mxu0 0.0
        %717 = vmatprep.mubr.f32.mxu0 0.0
        %718 = vmatmul.mubr.f32.gmra.mrb[0].mxu0 %v568
        %v719 = vpop.f32.mrb[0].mxu0
        %v720 = vadd.f32 %v651, %v719
        %v721 = vpop.f32.mrb[0].mxu0
        %722 = vdwg.mxu0
        %v723 = vmul.f32 %v551, 0.35355338
        %725 = vrot.lane.b32.xlu0 %v723, 120
        %v726 = vpop.permute.xlu0 %725
        %728 = vrot.lane.b32.xlu0 %v723, 112
        %v729 = vpop.permute.xlu0 %728
        %731 = vrot.lane.b32.xlu0 %v723, 104
        %v732 = vpop.permute.xlu0 %731
        %v734 = vcombine.low %v723, %v729
        %v735 = vcombine.high %v723, %v729
        %v737 = vunpack.c.l.s4 1983009808
        %v738 = vunpack.c.0.s8 %v737
        %v739 = vlaneseq
        %v740 = vshrl.u32 %v739, 7
        %v741 = vsub.s32 %v738, %v740
        %v742 = vrot.slane %v734, %v741
        %v744 = vunpack.c.l.s4 1983009808
        %v745 = vunpack.c.0.s8 %v744
        %v746 = vlaneseq
        %v747 = vshrl.u32 %v746, 7
        %v748 = vsub.s32 %v745, %v747
        %v749 = vrot.slane %v735, %v748
        %v750 = vcombine.low %v726, %v732
        %v751 = vcombine.high %v726, %v732
        %v753 = vunpack.c.l.s4 1983009808
        %v754 = vunpack.c.0.s8 %v753
        %v755 = vlaneseq
        %v756 = vshrl.u32 %v755, 7
        %v757 = vsub.s32 %v754, %v756
        %v758 = vrot.slane %v750, %v757
        %v760 = vunpack.c.l.s4 1983009808
        %v761 = vunpack.c.0.s8 %v760
        %v762 = vlaneseq
        %v763 = vshrl.u32 %v762, 7
        %v764 = vsub.s32 %v761, %v763
        %v765 = vrot.slane %v751, %v764
        %v766 = vcombine.low %v742, %v758
        %v767 = vcombine.high %v742, %v758
        %v769 = vunpack.c.l.s4 1934713408
        %v770 = vunpack.c.0.s8 %v769
        %v771 = vlaneseq
        %v772 = vshrl.u32 %v771, 7
        %v773 = vsub.s32 %v770, %v772
        %v774 = vrot.slane %v766, %v773
        %v776 = vunpack.c.l.s4 1934713408
        %v777 = vunpack.c.0.s8 %v776
        %v778 = vlaneseq
        %v779 = vshrl.u32 %v778, 7
        %v780 = vsub.s32 %v777, %v779
        %v781 = vrot.slane %v767, %v780
        %v782 = vcombine.low %v749, %v765
        %v783 = vcombine.high %v749, %v765
        %v785 = vunpack.c.l.s4 1934713408
        %v786 = vunpack.c.0.s8 %v785
        %v787 = vlaneseq
        %v788 = vshrl.u32 %v787, 7
        %v789 = vsub.s32 %v786, %v788
        %v790 = vrot.slane %v782, %v789
        %v792 = vunpack.c.l.s4 1934713408
        %v793 = vunpack.c.0.s8 %v792
        %v794 = vlaneseq
        %v795 = vshrl.u32 %v794, 7
        %v796 = vsub.s32 %v793, %v795
        %v797 = vrot.slane %v783, %v796
        %v798 = vcombine.high %v774, 0.0
        %v799 = vcombine.high %v781, 0.0
        %v800 = vcombine.high %v790, 0.0
        %v801 = vcombine.high %v797, 0.0
        %v802 = vcombine.low %v774, %v781
        %v804 = vunpack.c.l.s4 1983009808
        %v805 = vunpack.c.0.s8 %v804
        %v806 = vlaneseq
        %v807 = vshrl.u32 %v806, 7
        %v808 = vsub.s32 %v805, %v807
        %v809 = vrot.slane %v802, %v808
        %v810 = vcombine.low %v798, %v799
        %v812 = vunpack.c.l.s4 1983009808
        %v813 = vunpack.c.0.s8 %v812
        %v814 = vlaneseq
        %v815 = vshrl.u32 %v814, 7
        %v816 = vsub.s32 %v813, %v815
        %v817 = vrot.slane %v810, %v816
        %v818 = vcombine.low %v790, %v797
        %v820 = vunpack.c.l.s4 1983009808
        %v821 = vunpack.c.0.s8 %v820
        %v822 = vlaneseq
        %v823 = vshrl.u32 %v822, 7
        %v824 = vsub.s32 %v821, %v823
        %v825 = vrot.slane %v818, %v824
        %v826 = vcombine.low %v800, %v801
        %v828 = vunpack.c.l.s4 1983009808
        %v829 = vunpack.c.0.s8 %v828
        %v830 = vlaneseq
        %v831 = vshrl.u32 %v830, 7
        %v832 = vsub.s32 %v829, %v831
        %v833 = vrot.slane %v826, %v832
        %v834 = vcombine.low %v809, %v817
        %v835 = vcombine.high %v809, %v817
        %v837 = vunpack.c.l.s4 1934713408
        %v838 = vunpack.c.0.s8 %v837
        %v839 = vlaneseq
        %v840 = vshrl.u32 %v839, 7
        %v841 = vsub.s32 %v838, %v840
        %v842 = vrot.slane %v834, %v841
        %v844 = vunpack.c.l.s4 1934713408
        %v845 = vunpack.c.0.s8 %v844
        %v846 = vlaneseq
        %v847 = vshrl.u32 %v846, 7
        %v848 = vsub.s32 %v845, %v847
        %v849 = vrot.slane %v835, %v848
        %v850 = vcombine.low %v825, %v833
        %v851 = vcombine.high %v825, %v833
        %v853 = vunpack.c.l.s4 1934713408
        %v854 = vunpack.c.0.s8 %v853
        %v855 = vlaneseq
        %v856 = vshrl.u32 %v855, 7
        %v857 = vsub.s32 %v854, %v856
        %v858 = vrot.slane %v850, %v857
        %v860 = vunpack.c.l.s4 1934713408
        %v861 = vunpack.c.0.s8 %v860
        %v862 = vlaneseq
        %v863 = vshrl.u32 %v862, 7
        %v864 = vsub.s32 %v861, %v863
        %v865 = vrot.slane %v851, %v864
        %v866 = vcombine.low %v842, %v858
        %v867 = vcombine.high %v842, %v858
        %v868 = vcombine.low %v849, %v865
        %v869 = vcombine.high %v849, %v865
        %871 = vrot.lane.b32.xlu0 %v637, 120
        %v872 = vpop.permute.xlu0 %871
        %874 = vrot.lane.b32.xlu0 %v637, 112
        %v875 = vpop.permute.xlu0 %874
        %877 = vrot.lane.b32.xlu0 %v637, 104
        %v878 = vpop.permute.xlu0 %877
        %v880 = vcombine.low %v637, %v875
        %v881 = vcombine.high %v637, %v875
        %v883 = vunpack.c.l.s4 1983009808
        %v884 = vunpack.c.0.s8 %v883
        %v885 = vlaneseq
        %v886 = vshrl.u32 %v885, 7
        %v887 = vsub.s32 %v884, %v886
        %v888 = vrot.slane %v880, %v887
        %v890 = vunpack.c.l.s4 1983009808
        %v891 = vunpack.c.0.s8 %v890
        %v892 = vlaneseq
        %v893 = vshrl.u32 %v892, 7
        %v894 = vsub.s32 %v891, %v893
        %v895 = vrot.slane %v881, %v894
        %v896 = vcombine.low %v872, %v878
        %v897 = vcombine.high %v872, %v878
        %v899 = vunpack.c.l.s4 1983009808
        %v900 = vunpack.c.0.s8 %v899
        %v901 = vlaneseq
        %v902 = vshrl.u32 %v901, 7
        %v903 = vsub.s32 %v900, %v902
        %v904 = vrot.slane %v896, %v903
        %v906 = vunpack.c.l.s4 1983009808
        %v907 = vunpack.c.0.s8 %v906
        %v908 = vlaneseq
        %v909 = vshrl.u32 %v908, 7
        %v910 = vsub.s32 %v907, %v909
        %v911 = vrot.slane %v897, %v910
        %v912 = vcombine.low %v888, %v904
        %v913 = vcombine.high %v888, %v904
        %v915 = vunpack.c.l.s4 1934713408
        %v916 = vunpack.c.0.s8 %v915
        %v917 = vlaneseq
        %v918 = vshrl.u32 %v917, 7
        %v919 = vsub.s32 %v916, %v918
        %v920 = vrot.slane %v912, %v919
        %v922 = vunpack.c.l.s4 1934713408
        %v923 = vunpack.c.0.s8 %v922
        %v924 = vlaneseq
        %v925 = vshrl.u32 %v924, 7
        %v926 = vsub.s32 %v923, %v925
        %v927 = vrot.slane %v913, %v926
        %v928 = vcombine.low %v895, %v911
        %v929 = vcombine.high %v895, %v911
        %v931 = vunpack.c.l.s4 1934713408
        %v932 = vunpack.c.0.s8 %v931
        %v933 = vlaneseq
        %v934 = vshrl.u32 %v933, 7
        %v935 = vsub.s32 %v932, %v934
        %v936 = vrot.slane %v928, %v935
        %v938 = vunpack.c.l.s4 1934713408
        %v939 = vunpack.c.0.s8 %v938
        %v940 = vlaneseq
        %v941 = vshrl.u32 %v940, 7
        %v942 = vsub.s32 %v939, %v941
        %v943 = vrot.slane %v929, %v942
        %v944 = vcombine.high %v920, 0.0
        %v945 = vcombine.high %v927, 0.0
        %v946 = vcombine.high %v936, 0.0
        %v947 = vcombine.high %v943, 0.0
        %v948 = vcombine.low %v920, %v927
        %v950 = vunpack.c.l.s4 1983009808
        %v951 = vunpack.c.0.s8 %v950
        %v952 = vlaneseq
        %v953 = vshrl.u32 %v952, 7
        %v954 = vsub.s32 %v951, %v953
        %v955 = vrot.slane %v948, %v954
        %v956 = vcombine.low %v944, %v945
        %v958 = vunpack.c.l.s4 1983009808
        %v959 = vunpack.c.0.s8 %v958
        %v960 = vlaneseq
        %v961 = vshrl.u32 %v960, 7
        %v962 = vsub.s32 %v959, %v961
        %v963 = vrot.slane %v956, %v962
        %v964 = vcombine.low %v936, %v943
        %v966 = vunpack.c.l.s4 1983009808
        %v967 = vunpack.c.0.s8 %v966
        %v968 = vlaneseq
        %v969 = vshrl.u32 %v968, 7
        %v970 = vsub.s32 %v967, %v969
        %v971 = vrot.slane %v964, %v970
        %v972 = vcombine.low %v946, %v947
        %v974 = vunpack.c.l.s4 1983009808
        %v975 = vunpack.c.0.s8 %v974
        %v976 = vlaneseq
        %v977 = vshrl.u32 %v976, 7
        %v978 = vsub.s32 %v975, %v977
        %v979 = vrot.slane %v972, %v978
        %v980 = vcombine.low %v955, %v963
        %v981 = vcombine.high %v955, %v963
        %v983 = vunpack.c.l.s4 1934713408
        %v984 = vunpack.c.0.s8 %v983
        %v985 = vlaneseq
        %v986 = vshrl.u32 %v985, 7
        %v987 = vsub.s32 %v984, %v986
        %v988 = vrot.slane %v980, %v987
        %v990 = vunpack.c.l.s4 1934713408
        %v991 = vunpack.c.0.s8 %v990
        %v992 = vlaneseq
        %v993 = vshrl.u32 %v992, 7
        %v994 = vsub.s32 %v991, %v993
        %v995 = vrot.slane %v981, %v994
        %v996 = vcombine.low %v971, %v979
        %v997 = vcombine.high %v971, %v979
        %v999 = vunpack.c.l.s4 1934713408
        %v1000 = vunpack.c.0.s8 %v999
        %v1001 = vlaneseq
        %v1002 = vshrl.u32 %v1001, 7
        %v1003 = vsub.s32 %v1000, %v1002
        %v1004 = vrot.slane %v996, %v1003
        %v1006 = vunpack.c.l.s4 1934713408
        %v1007 = vunpack.c.0.s8 %v1006
        %v1008 = vlaneseq
        %v1009 = vshrl.u32 %v1008, 7
        %v1010 = vsub.s32 %v1007, %v1009
        %v1011 = vrot.slane %v997, %v1010
        %v1012 = vcombine.low %v988, %v1004
        %v1013 = vcombine.high %v988, %v1004
        %v1014 = vcombine.low %v995, %v1011
        %v1015 = vcombine.high %v995, %v1011
        %1017 = vrot.lane.b32.xlu0 %v720, 120
        %v1018 = vpop.permute.xlu0 %1017
        %1020 = vrot.lane.b32.xlu0 %v720, 112
        %v1021 = vpop.permute.xlu0 %1020
        %1023 = vrot.lane.b32.xlu0 %v720, 104
        %v1024 = vpop.permute.xlu0 %1023
        %v1026 = vcombine.low %v720, %v1021
        %v1027 = vcombine.high %v720, %v1021
        %v1029 = vunpack.c.l.s4 1983009808
        %v1030 = vunpack.c.0.s8 %v1029
        %v1031 = vlaneseq
        %v1032 = vshrl.u32 %v1031, 7
        %v1033 = vsub.s32 %v1030, %v1032
        %v1034 = vrot.slane %v1026, %v1033
        %v1036 = vunpack.c.l.s4 1983009808
        %v1037 = vunpack.c.0.s8 %v1036
        %v1038 = vlaneseq
        %v1039 = vshrl.u32 %v1038, 7
        %v1040 = vsub.s32 %v1037, %v1039
        %v1041 = vrot.slane %v1027, %v1040
        %v1042 = vcombine.low %v1018, %v1024
        %v1043 = vcombine.high %v1018, %v1024
        %v1045 = vunpack.c.l.s4 1983009808
        %v1046 = vunpack.c.0.s8 %v1045
        %v1047 = vlaneseq
        %v1048 = vshrl.u32 %v1047, 7
        %v1049 = vsub.s32 %v1046, %v1048
        %v1050 = vrot.slane %v1042, %v1049
        %v1052 = vunpack.c.l.s4 1983009808
        %v1053 = vunpack.c.0.s8 %v1052
        %v1054 = vlaneseq
        %v1055 = vshrl.u32 %v1054, 7
        %v1056 = vsub.s32 %v1053, %v1055
        %v1057 = vrot.slane %v1043, %v1056
        %v1058 = vcombine.low %v1034, %v1050
        %v1059 = vcombine.high %v1034, %v1050
        %v1061 = vunpack.c.l.s4 1934713408
        %v1062 = vunpack.c.0.s8 %v1061
        %v1063 = vlaneseq
        %v1064 = vshrl.u32 %v1063, 7
        %v1065 = vsub.s32 %v1062, %v1064
        %v1066 = vrot.slane %v1058, %v1065
        %v1068 = vunpack.c.l.s4 1934713408
        %v1069 = vunpack.c.0.s8 %v1068
        %v1070 = vlaneseq
        %v1071 = vshrl.u32 %v1070, 7
        %v1072 = vsub.s32 %v1069, %v1071
        %v1073 = vrot.slane %v1059, %v1072
        %v1074 = vcombine.low %v1041, %v1057
        %v1075 = vcombine.high %v1041, %v1057
        %v1077 = vunpack.c.l.s4 1934713408
        %v1078 = vunpack.c.0.s8 %v1077
        %v1079 = vlaneseq
        %v1080 = vshrl.u32 %v1079, 7
        %v1081 = vsub.s32 %v1078, %v1080
        %v1082 = vrot.slane %v1074, %v1081
        %v1084 = vunpack.c.l.s4 1934713408
        %v1085 = vunpack.c.0.s8 %v1084
        %v1086 = vlaneseq
        %v1087 = vshrl.u32 %v1086, 7
        %v1088 = vsub.s32 %v1085, %v1087
        %v1089 = vrot.slane %v1075, %v1088
        %v1090 = vcombine.high %v1066, 0.0
        %v1091 = vcombine.high %v1073, 0.0
        %v1092 = vcombine.high %v1082, 0.0
        %v1093 = vcombine.high %v1089, 0.0
        %v1094 = vcombine.low %v1066, %v1073
        %v1096 = vunpack.c.l.s4 1983009808
        %v1097 = vunpack.c.0.s8 %v1096
        %v1098 = vlaneseq
        %v1099 = vshrl.u32 %v1098, 7
        %v1100 = vsub.s32 %v1097, %v1099
        %v1101 = vrot.slane %v1094, %v1100
        %v1102 = vcombine.low %v1090, %v1091
        %v1104 = vunpack.c.l.s4 1983009808
        %v1105 = vunpack.c.0.s8 %v1104
        %v1106 = vlaneseq
        %v1107 = vshrl.u32 %v1106, 7
        %v1108 = vsub.s32 %v1105, %v1107
        %v1109 = vrot.slane %v1102, %v1108
        %v1110 = vcombine.low %v1082, %v1089
        %v1112 = vunpack.c.l.s4 1983009808
        %v1113 = vunpack.c.0.s8 %v1112
        %v1114 = vlaneseq
        %v1115 = vshrl.u32 %v1114, 7
        %v1116 = vsub.s32 %v1113, %v1115
        %v1117 = vrot.slane %v1110, %v1116
        %v1118 = vcombine.low %v1092, %v1093
        %v1120 = vunpack.c.l.s4 1983009808
        %v1121 = vunpack.c.0.s8 %v1120
        %v1122 = vlaneseq
        %v1123 = vshrl.u32 %v1122, 7
        %v1124 = vsub.s32 %v1121, %v1123
        %v1125 = vrot.slane %v1118, %v1124
        %v1126 = vcombine.low %v1101, %v1109
        %v1127 = vcombine.high %v1101, %v1109
        %v1129 = vunpack.c.l.s4 1934713408
        %v1130 = vunpack.c.0.s8 %v1129
        %v1131 = vlaneseq
        %v1132 = vshrl.u32 %v1131, 7
        %v1133 = vsub.s32 %v1130, %v1132
        %v1134 = vrot.slane %v1126, %v1133
        %v1136 = vunpack.c.l.s4 1934713408
        %v1137 = vunpack.c.0.s8 %v1136
        %v1138 = vlaneseq
        %v1139 = vshrl.u32 %v1138, 7
        %v1140 = vsub.s32 %v1137, %v1139
        %v1141 = vrot.slane %v1127, %v1140
        %v1142 = vcombine.low %v1117, %v1125
        %v1143 = vcombine.high %v1117, %v1125
        %v1145 = vunpack.c.l.s4 1934713408
        %v1146 = vunpack.c.0.s8 %v1145
        %v1147 = vlaneseq
        %v1148 = vshrl.u32 %v1147, 7
        %v1149 = vsub.s32 %v1146, %v1148
        %v1150 = vrot.slane %v1142, %v1149
        %v1152 = vunpack.c.l.s4 1934713408
        %v1153 = vunpack.c.0.s8 %v1152
        %v1154 = vlaneseq
        %v1155 = vshrl.u32 %v1154, 7
        %v1156 = vsub.s32 %v1153, %v1155
        %v1157 = vrot.slane %v1143, %v1156
        %v1158 = vcombine.low %v1134, %v1150
        %v1159 = vcombine.high %v1134, %v1150
        %v1160 = vcombine.low %v1141, %v1157
        %v1161 = vcombine.high %v1141, %v1157
        %v1162 = vld [vmem:[%s466] sm:$0xff]
        %vm1163 = vcmask 64512
        %v1165 = vsel %vm1163, %v866, 0
        %v1168 = vsel %vm1163, %v1012, 0
        %1170 = vmatprep.subr.mxu0 0.0
        %1171 = vmatpush1.xpose.msra.mxu0 %v1168
        %1172 = vmatprep.subr.mxu0 0.0
        %1173 = vmatpush1.xpose.msra.mxu0 0.0
        %1174 = vmatprep.subr.mxu0 0.0
        %1175 = vmatpush1.xpose.msra.mxu0 0.0
        %1176 = vmatprep.subr.mxu0 0.0
        %1177 = vmatpush1.xpose.msra.mxu0 0.0
        %1178 = vmatprep.subr.mxu0 0.0
        %1179 = vmatpush1.xpose.msra.mxu0 0.0
        %1180 = vmatprep.subr.mxu0 0.0
        %1181 = vmatpush1.xpose.msra.mxu0 0.0
        %1182 = vmatprep.subr.mxu0 0.0
        %1183 = vmatpush1.xpose.msra.mxu0 0.0
        %1184 = vmatprep.subr.mxu0 0.0
        %1185 = vmatpush1.xpose.msra.mxu0 0.0
        %1186 = vmatprep.subr.mxu0 0.0
        %1187 = vmatpush1.xpose.msra.mxu0 0.0
        %1188 = vmatprep.subr.mxu0 0.0
        %1189 = vmatpush1.xpose.msra.mxu0 0.0
        %1190 = vmatprep.subr.mxu0 0.0
        %1191 = vmatpush1.xpose.msra.mxu0 0.0
        %1192 = vmatprep.subr.mxu0 0.0
        %1193 = vmatpush1.xpose.msra.mxu0 0.0
        %1194 = vmatprep.subr.mxu0 0.0
        %1195 = vmatpush1.xpose.msra.mxu0 0.0
        %1196 = vmatprep.subr.mxu0 0.0
        %1197 = vmatpush1.xpose.msra.mxu0 0.0
        %1198 = vmatprep.subr.mxu0 0.0
        %1199 = vmatpush1.xpose.msra.mxu0 0.0
        %1200 = vmatprep.subr.mxu0 0.0
        %1201 = vmatpush1.xpose.msra.mxu0 0.0
        %1202 = vmatprep.subr.mxu0 0.0
        %1203 = vmatpush1.xpose.msra.mxu0 0.0
        %1204 = vmatprep.subr.mxu0 0.0
        %1205 = vmatpush1.xpose.msra.mxu0 0.0
        %1206 = vmatprep.subr.mxu0 0.0
        %1207 = vmatpush1.xpose.msra.mxu0 0.0
        %1208 = vmatprep.subr.mxu0 0.0
        %1209 = vmatpush1.xpose.msra.mxu0 0.0
        %1210 = vmatprep.subr.mxu0 0.0
        %1211 = vmatpush1.xpose.msra.mxu0 0.0
        %1212 = vmatprep.subr.mxu0 0.0
        %1213 = vmatpush1.xpose.msra.mxu0 0.0
        %1214 = vmatprep.subr.mxu0 0.0
        %1215 = vmatpush1.xpose.msra.mxu0 0.0
        %1216 = vmatprep.subr.mxu0 0.0
        %1217 = vmatpush1.xpose.msra.mxu0 0.0
        %1218 = vmatprep.subr.mxu0 0.0
        %1219 = vmatpush1.xpose.msra.mxu0 0.0
        %1220 = vmatprep.subr.mxu0 0.0
        %1221 = vmatpush1.xpose.msra.mxu0 0.0
        %1222 = vmatprep.subr.mxu0 0.0
        %1223 = vmatpush1.xpose.msra.mxu0 0.0
        %1224 = vmatprep.subr.mxu0 0.0
        %1225 = vmatpush1.xpose.msra.mxu0 0.0
        %1226 = vmatprep.subr.mxu0 0.0
        %1227 = vmatpush1.xpose.msra.mxu0 0.0
        %1228 = vmatprep.subr.mxu0 0.0
        %1229 = vmatpush1.xpose.msra.mxu0 0.0
        %1230 = vmatprep.subr.mxu0 0.0
        %1231 = vmatpush1.xpose.msra.mxu0 0.0
        %1232 = vmatprep.subr.mxu0 0.0
        %1233 = vmatpush1.xpose.msra.mxu0 0.0
        %1234 = vmatprep.mubr.f32.mxu0 0.0
        %1235 = vmatmul.mubr.f32.gmra.mrb[0].mxu0 %v1165
        %v1236 = vpop.f32.mrb[0].mxu0
        %v1237 = vadd.f32 %v1162, %v1236
        %v1238 = vpop.f32.mrb[0].mxu0
        %1239 = vdwg.mxu0
        %v1241 = vsel %vm1163, %v867, 0
        %v1244 = vsel %vm1163, %v1013, 0
        %1246 = vmatprep.subr.mxu0 0.0
        %1247 = vmatpush1.xpose.msra.mxu0 %v1244
        %1248 = vmatprep.subr.mxu0 0.0
        %1249 = vmatpush1.xpose.msra.mxu0 0.0
        %1250 = vmatprep.subr.mxu0 0.0
        %1251 = vmatpush1.xpose.msra.mxu0 0.0
        %1252 = vmatprep.subr.mxu0 0.0
        %1253 = vmatpush1.xpose.msra.mxu0 0.0
        %1254 = vmatprep.subr.mxu0 0.0
        %1255 = vmatpush1.xpose.msra.mxu0 0.0
        %1256 = vmatprep.subr.mxu0 0.0
        %1257 = vmatpush1.xpose.msra.mxu0 0.0
        %1258 = vmatprep.subr.mxu0 0.0
        %1259 = vmatpush1.xpose.msra.mxu0 0.0
        %1260 = vmatprep.subr.mxu0 0.0
        %1261 = vmatpush1.xpose.msra.mxu0 0.0
        %1262 = vmatprep.subr.mxu0 0.0
        %1263 = vmatpush1.xpose.msra.mxu0 0.0
        %1264 = vmatprep.subr.mxu0 0.0
        %1265 = vmatpush1.xpose.msra.mxu0 0.0
        %1266 = vmatprep.subr.mxu0 0.0
        %1267 = vmatpush1.xpose.msra.mxu0 0.0
        %1268 = vmatprep.subr.mxu0 0.0
        %1269 = vmatpush1.xpose.msra.mxu0 0.0
        %1270 = vmatprep.subr.mxu0 0.0
        %1271 = vmatpush1.xpose.msra.mxu0 0.0
        %1272 = vmatprep.subr.mxu0 0.0
        %1273 = vmatpush1.xpose.msra.mxu0 0.0
        %1274 = vmatprep.subr.mxu0 0.0
        %1275 = vmatpush1.xpose.msra.mxu0 0.0
        %1276 = vmatprep.subr.mxu0 0.0
        %1277 = vmatpush1.xpose.msra.mxu0 0.0
        %1278 = vmatprep.subr.mxu0 0.0
        %1279 = vmatpush1.xpose.msra.mxu0 0.0
        %1280 = vmatprep.subr.mxu0 0.0
        %1281 = vmatpush1.xpose.msra.mxu0 0.0
        %1282 = vmatprep.subr.mxu0 0.0
        %1283 = vmatpush1.xpose.msra.mxu0 0.0
        %1284 = vmatprep.subr.mxu0 0.0
        %1285 = vmatpush1.xpose.msra.mxu0 0.0
        %1286 = vmatprep.subr.mxu0 0.0
        %1287 = vmatpush1.xpose.msra.mxu0 0.0
        %1288 = vmatprep.subr.mxu0 0.0
        %1289 = vmatpush1.xpose.msra.mxu0 0.0
        %1290 = vmatprep.subr.mxu0 0.0
        %1291 = vmatpush1.xpose.msra.mxu0 0.0
        %1292 = vmatprep.subr.mxu0 0.0
        %1293 = vmatpush1.xpose.msra.mxu0 0.0
        %1294 = vmatprep.subr.mxu0 0.0
        %1295 = vmatpush1.xpose.msra.mxu0 0.0
        %1296 = vmatprep.subr.mxu0 0.0
        %1297 = vmatpush1.xpose.msra.mxu0 0.0
        %1298 = vmatprep.subr.mxu0 0.0
        %1299 = vmatpush1.xpose.msra.mxu0 0.0
        %1300 = vmatprep.subr.mxu0 0.0
        %1301 = vmatpush1.xpose.msra.mxu0 0.0
        %1302 = vmatprep.subr.mxu0 0.0
        %1303 = vmatpush1.xpose.msra.mxu0 0.0
        %1304 = vmatprep.subr.mxu0 0.0
        %1305 = vmatpush1.xpose.msra.mxu0 0.0
        %1306 = vmatprep.subr.mxu0 0.0
        %1307 = vmatpush1.xpose.msra.mxu0 0.0
        %1308 = vmatprep.subr.mxu0 0.0
        %1309 = vmatpush1.xpose.msra.mxu0 0.0
        %1310 = vmatprep.mubr.f32.mxu0 0.0
        %1311 = vmatmul.mubr.f32.gmra.mrb[0].mxu0 %v1241
        %v1312 = vpop.f32.mrb[0].mxu0
        %v1313 = vadd.f32 %v1162, %v1312
        %v1314 = vpop.f32.mrb[0].mxu0
        %1315 = vdwg.mxu0
        %v1317 = vsel %vm1163, %v868, 0
        %v1320 = vsel %vm1163, %v1014, 0
        %1322 = vmatprep.subr.mxu0 0.0
        %1323 = vmatpush1.xpose.msra.mxu0 %v1320
        %1324 = vmatprep.subr.mxu0 0.0
        %1325 = vmatpush1.xpose.msra.mxu0 0.0
        %1326 = vmatprep.subr.mxu0 0.0
        %1327 = vmatpush1.xpose.msra.mxu0 0.0
        %1328 = vmatprep.subr.mxu0 0.0
        %1329 = vmatpush1.xpose.msra.mxu0 0.0
        %1330 = vmatprep.subr.mxu0 0.0
        %1331 = vmatpush1.xpose.msra.mxu0 0.0
        %1332 = vmatprep.subr.mxu0 0.0
        %1333 = vmatpush1.xpose.msra.mxu0 0.0
        %1334 = vmatprep.subr.mxu0 0.0
        %1335 = vmatpush1.xpose.msra.mxu0 0.0
        %1336 = vmatprep.subr.mxu0 0.0
        %1337 = vmatpush1.xpose.msra.mxu0 0.0
        %1338 = vmatprep.subr.mxu0 0.0
        %1339 = vmatpush1.xpose.msra.mxu0 0.0
        %1340 = vmatprep.subr.mxu0 0.0
        %1341 = vmatpush1.xpose.msra.mxu0 0.0
        %1342 = vmatprep.subr.mxu0 0.0
        %1343 = vmatpush1.xpose.msra.mxu0 0.0
        %1344 = vmatprep.subr.mxu0 0.0
        %1345 = vmatpush1.xpose.msra.mxu0 0.0
        %1346 = vmatprep.subr.mxu0 0.0
        %1347 = vmatpush1.xpose.msra.mxu0 0.0
        %1348 = vmatprep.subr.mxu0 0.0
        %1349 = vmatpush1.xpose.msra.mxu0 0.0
        %1350 = vmatprep.subr.mxu0 0.0
        %1351 = vmatpush1.xpose.msra.mxu0 0.0
        %1352 = vmatprep.subr.mxu0 0.0
        %1353 = vmatpush1.xpose.msra.mxu0 0.0
        %1354 = vmatprep.subr.mxu0 0.0
        %1355 = vmatpush1.xpose.msra.mxu0 0.0
        %1356 = vmatprep.subr.mxu0 0.0
        %1357 = vmatpush1.xpose.msra.mxu0 0.0
        %1358 = vmatprep.subr.mxu0 0.0
        %1359 = vmatpush1.xpose.msra.mxu0 0.0
        %1360 = vmatprep.subr.mxu0 0.0
        %1361 = vmatpush1.xpose.msra.mxu0 0.0
        %1362 = vmatprep.subr.mxu0 0.0
        %1363 = vmatpush1.xpose.msra.mxu0 0.0
        %1364 = vmatprep.subr.mxu0 0.0
        %1365 = vmatpush1.xpose.msra.mxu0 0.0
        %1366 = vmatprep.subr.mxu0 0.0
        %1367 = vmatpush1.xpose.msra.mxu0 0.0
        %1368 = vmatprep.subr.mxu0 0.0
        %1369 = vmatpush1.xpose.msra.mxu0 0.0
        %1370 = vmatprep.subr.mxu0 0.0
        %1371 = vmatpush1.xpose.msra.mxu0 0.0
        %1372 = vmatprep.subr.mxu0 0.0
        %1373 = vmatpush1.xpose.msra.mxu0 0.0
        %1374 = vmatprep.subr.mxu0 0.0
        %1375 = vmatpush1.xpose.msra.mxu0 0.0
        %1376 = vmatprep.subr.mxu0 0.0
        %1377 = vmatpush1.xpose.msra.mxu0 0.0
        %1378 = vmatprep.subr.mxu0 0.0
        %1379 = vmatpush1.xpose.msra.mxu0 0.0
        %1380 = vmatprep.subr.mxu0 0.0
        %1381 = vmatpush1.xpose.msra.mxu0 0.0
        %1382 = vmatprep.subr.mxu0 0.0
        %1383 = vmatpush1.xpose.msra.mxu0 0.0
        %1384 = vmatprep.subr.mxu0 0.0
        %1385 = vmatpush1.xpose.msra.mxu0 0.0
        %1386 = vmatprep.mubr.f32.mxu0 0.0
        %1387 = vmatmul.mubr.f32.gmra.mrb[0].mxu0 %v1317
        %v1388 = vpop.f32.mrb[0].mxu0
        %v1389 = vadd.f32 %v1162, %v1388
        %v1390 = vpop.f32.mrb[0].mxu0
        %1391 = vdwg.mxu0
        %v1393 = vsel %vm1163, %v869, 0
        %v1396 = vsel %vm1163, %v1015, 0
        %1398 = vmatprep.subr.mxu0 0.0
        %1399 = vmatpush1.xpose.msra.mxu0 %v1396
        %1400 = vmatprep.subr.mxu0 0.0
        %1401 = vmatpush1.xpose.msra.mxu0 0.0
        %1402 = vmatprep.subr.mxu0 0.0
        %1403 = vmatpush1.xpose.msra.mxu0 0.0
        %1404 = vmatprep.subr.mxu0 0.0
        %1405 = vmatpush1.xpose.msra.mxu0 0.0
        %1406 = vmatprep.subr.mxu0 0.0
        %1407 = vmatpush1.xpose.msra.mxu0 0.0
        %1408 = vmatprep.subr.mxu0 0.0
        %1409 = vmatpush1.xpose.msra.mxu0 0.0
        %1410 = vmatprep.subr.mxu0 0.0
        %1411 = vmatpush1.xpose.msra.mxu0 0.0
        %1412 = vmatprep.subr.mxu0 0.0
        %1413 = vmatpush1.xpose.msra.mxu0 0.0
        %1414 = vmatprep.subr.mxu0 0.0
        %1415 = vmatpush1.xpose.msra.mxu0 0.0
        %1416 = vmatprep.subr.mxu0 0.0
        %1417 = vmatpush1.xpose.msra.mxu0 0.0
        %1418 = vmatprep.subr.mxu0 0.0
        %1419 = vmatpush1.xpose.msra.mxu0 0.0
        %1420 = vmatprep.subr.mxu0 0.0
        %1421 = vmatpush1.xpose.msra.mxu0 0.0
        %1422 = vmatprep.subr.mxu0 0.0
        %1423 = vmatpush1.xpose.msra.mxu0 0.0
        %1424 = vmatprep.subr.mxu0 0.0
        %1425 = vmatpush1.xpose.msra.mxu0 0.0
        %1426 = vmatprep.subr.mxu0 0.0
        %1427 = vmatpush1.xpose.msra.mxu0 0.0
        %1428 = vmatprep.subr.mxu0 0.0
        %1429 = vmatpush1.xpose.msra.mxu0 0.0
        %1430 = vmatprep.subr.mxu0 0.0
        %1431 = vmatpush1.xpose.msra.mxu0 0.0
        %1432 = vmatprep.subr.mxu0 0.0
        %1433 = vmatpush1.xpose.msra.mxu0 0.0
        %1434 = vmatprep.subr.mxu0 0.0
        %1435 = vmatpush1.xpose.msra.mxu0 0.0
        %1436 = vmatprep.subr.mxu0 0.0
        %1437 = vmatpush1.xpose.msra.mxu0 0.0
        %1438 = vmatprep.subr.mxu0 0.0
        %1439 = vmatpush1.xpose.msra.mxu0 0.0
        %1440 = vmatprep.subr.mxu0 0.0
        %1441 = vmatpush1.xpose.msra.mxu0 0.0
        %1442 = vmatprep.subr.mxu0 0.0
        %1443 = vmatpush1.xpose.msra.mxu0 0.0
        %1444 = vmatprep.subr.mxu0 0.0
        %1445 = vmatpush1.xpose.msra.mxu0 0.0
        %1446 = vmatprep.subr.mxu0 0.0
        %1447 = vmatpush1.xpose.msra.mxu0 0.0
        %1448 = vmatprep.subr.mxu0 0.0
        %1449 = vmatpush1.xpose.msra.mxu0 0.0
        %1450 = vmatprep.subr.mxu0 0.0
        %1451 = vmatpush1.xpose.msra.mxu0 0.0
        %1452 = vmatprep.subr.mxu0 0.0
        %1453 = vmatpush1.xpose.msra.mxu0 0.0
        %1454 = vmatprep.subr.mxu0 0.0
        %1455 = vmatpush1.xpose.msra.mxu0 0.0
        %1456 = vmatprep.subr.mxu0 0.0
        %1457 = vmatpush1.xpose.msra.mxu0 0.0
        %1458 = vmatprep.subr.mxu0 0.0
        %1459 = vmatpush1.xpose.msra.mxu0 0.0
        %1460 = vmatprep.subr.mxu0 0.0
        %1461 = vmatpush1.xpose.msra.mxu0 0.0
        %1462 = vmatprep.mubr.f32.mxu0 0.0
        %1463 = vmatmul.mubr.f32.gmra.mrb[0].mxu0 %v1393
        %v1464 = vpop.f32.mrb[0].mxu0
        %v1465 = vadd.f32 %v1162, %v1464
        %v1466 = vpop.f32.mrb[0].mxu0
        %1467 = vdwg.mxu0
        %v1468 = vsel %vm1163, %v1237, -inf
        %1469 = vmax.xlane.f32.xlu0 %v1468
        %v1470 = vpop.xlane.xlu0 %1469
        %v1471 = vsel %vm1163, %v1313, -inf
        %1472 = vmax.xlane.f32.xlu0 %v1471
        %v1473 = vpop.xlane.xlu0 %1472
        %v1474 = vsel %vm1163, %v1389, -inf
        %1475 = vmax.xlane.f32.xlu0 %v1474
        %v1476 = vpop.xlane.xlu0 %1475
        %v1477 = vsel %vm1163, %v1465, -inf
        %1478 = vmax.xlane.f32.xlu0 %v1477
        %v1479 = vpop.xlane.xlu0 %1478
        %v1480 = vsub.f32 %v1237, %v1470
        %v1481 = vsub.f32 %v1313, %v1473
        %v1482 = vsub.f32 %v1389, %v1476
        %v1483 = vsub.f32 %v1465, %v1479
        %v1484 = vmul.f32 %v1480, 1.442695
        %v1485 = vpow.pop %v1484
        %v1486 = vmul.f32 %v1481, 1.442695
        %v1487 = vpow.pop %v1486
        %v1488 = vmul.f32 %v1482, 1.442695
        %v1489 = vpow.pop %v1488
        %v1490 = vmul.f32 %v1483, 1.442695
        %v1491 = vpow.pop %v1490
        %v1492 = vsel %vm1163, %v1485, 0.0
        %1493 = vadd.xlane.f32.xlu0 %v1492
        %v1494 = vpop.xlane.xlu0 %1493
        %v1495 = vsel %vm1163, %v1487, 0.0
        %1496 = vadd.xlane.f32.xlu0 %v1495
        %v1497 = vpop.xlane.xlu0 %1496
        %v1498 = vsel %vm1163, %v1489, 0.0
        %1499 = vadd.xlane.f32.xlu0 %v1498
        %v1500 = vpop.xlane.xlu0 %1499
        %v1501 = vsel %vm1163, %v1491, 0.0
        %1502 = vadd.xlane.f32.xlu0 %v1501
        %v1503 = vpop.xlane.xlu0 %1502
        %v1504 = vrcp.pop %v1494
        %v1505 = vrcp.pop %v1497
        %v1506 = vrcp.pop %v1500
        %v1507 = vrcp.pop %v1503
        %v1508 = vmul.f32 %v1485, %v1504
        %v1509 = vmul.f32 %v1487, %v1505
        %v1510 = vmul.f32 %v1489, %v1506
        %v1511 = vmul.f32 %v1491, %v1507
        %v1513 = vsel %vm1163, %v1508, 0
        %1515 = vmatprep.subr.mxu0 0.0
        %1516 = vmatpush1.msra.mxu0 %v1158
        %1517 = vmatprep.subr.mxu0 0.0
        %1518 = vmatpush1.msra.mxu0 0.0
        %1519 = vmatprep.subr.mxu0 0.0
        %1520 = vmatpush1.msra.mxu0 0.0
        %1521 = vmatprep.subr.mxu0 0.0
        %1522 = vmatpush1.msra.mxu0 0.0
        %1523 = vmatprep.subr.mxu0 0.0
        %1524 = vmatpush1.msra.mxu0 0.0
        %1525 = vmatprep.subr.mxu0 0.0
        %1526 = vmatpush1.msra.mxu0 0.0
        %1527 = vmatprep.subr.mxu0 0.0
        %1528 = vmatpush1.msra.mxu0 0.0
        %1529 = vmatprep.subr.mxu0 0.0
        %1530 = vmatpush1.msra.mxu0 0.0
        %1531 = vmatprep.subr.mxu0 0.0
        %1532 = vmatpush1.msra.mxu0 0.0
        %1533 = vmatprep.subr.mxu0 0.0
        %1534 = vmatpush1.msra.mxu0 0.0
        %1535 = vmatprep.subr.mxu0 0.0
        %1536 = vmatpush1.msra.mxu0 0.0
        %1537 = vmatprep.subr.mxu0 0.0
        %1538 = vmatpush1.msra.mxu0 0.0
        %1539 = vmatprep.subr.mxu0 0.0
        %1540 = vmatpush1.msra.mxu0 0.0
        %1541 = vmatprep.subr.mxu0 0.0
        %1542 = vmatpush1.msra.mxu0 0.0
        %1543 = vmatprep.subr.mxu0 0.0
        %1544 = vmatpush1.msra.mxu0 0.0
        %1545 = vmatprep.subr.mxu0 0.0
        %1546 = vmatpush1.msra.mxu0 0.0
        %1547 = vmatprep.subr.mxu0 0.0
        %1548 = vmatpush1.msra.mxu0 0.0
        %1549 = vmatprep.subr.mxu0 0.0
        %1550 = vmatpush1.msra.mxu0 0.0
        %1551 = vmatprep.subr.mxu0 0.0
        %1552 = vmatpush1.msra.mxu0 0.0
        %1553 = vmatprep.subr.mxu0 0.0
        %1554 = vmatpush1.msra.mxu0 0.0
        %1555 = vmatprep.subr.mxu0 0.0
        %1556 = vmatpush1.msra.mxu0 0.0
        %1557 = vmatprep.subr.mxu0 0.0
        %1558 = vmatpush1.msra.mxu0 0.0
        %1559 = vmatprep.subr.mxu0 0.0
        %1560 = vmatpush1.msra.mxu0 0.0
        %1561 = vmatprep.subr.mxu0 0.0
        %1562 = vmatpush1.msra.mxu0 0.0
        %1563 = vmatprep.subr.mxu0 0.0
        %1564 = vmatpush1.msra.mxu0 0.0
        %1565 = vmatprep.subr.mxu0 0.0
        %1566 = vmatpush1.msra.mxu0 0.0
        %1567 = vmatprep.subr.mxu0 0.0
        %1568 = vmatpush1.msra.mxu0 0.0
        %1569 = vmatprep.subr.mxu0 0.0
        %1570 = vmatpush1.msra.mxu0 0.0
        %1571 = vmatprep.subr.mxu0 0.0
        %1572 = vmatpush1.msra.mxu0 0.0
        %1573 = vmatprep.subr.mxu0 0.0
        %1574 = vmatpush1.msra.mxu0 0.0
        %1575 = vmatprep.subr.mxu0 0.0
        %1576 = vmatpush1.msra.mxu0 0.0
        %1577 = vmatprep.subr.mxu0 0.0
        %1578 = vmatpush1.msra.mxu0 0.0
        %1579 = vmatprep.mubr.f32.mxu0 0.0
        %1580 = vmatmul.mubr.f32.gmra.mrb[0].mxu0 %v1513
        %v1581 = vpop.f32.mrb[0].mxu0
        %v1582 = vadd.f32 0.0, %v1581
        %v1583 = vpop.f32.mrb[0].mxu0
        %1584 = vdwg.mxu0
        %v1586 = vsel %vm1163, %v1509, 0
        %1588 = vmatprep.subr.mxu0 0.0
        %1589 = vmatpush1.msra.mxu0 %v1159
        %1590 = vmatprep.subr.mxu0 0.0
        %1591 = vmatpush1.msra.mxu0 0.0
        %1592 = vmatprep.subr.mxu0 0.0
        %1593 = vmatpush1.msra.mxu0 0.0
        %1594 = vmatprep.subr.mxu0 0.0
        %1595 = vmatpush1.msra.mxu0 0.0
        %1596 = vmatprep.subr.mxu0 0.0
        %1597 = vmatpush1.msra.mxu0 0.0
        %1598 = vmatprep.subr.mxu0 0.0
        %1599 = vmatpush1.msra.mxu0 0.0
        %1600 = vmatprep.subr.mxu0 0.0
        %1601 = vmatpush1.msra.mxu0 0.0
        %1602 = vmatprep.subr.mxu0 0.0
        %1603 = vmatpush1.msra.mxu0 0.0
        %1604 = vmatprep.subr.mxu0 0.0
        %1605 = vmatpush1.msra.mxu0 0.0
        %1606 = vmatprep.subr.mxu0 0.0
        %1607 = vmatpush1.msra.mxu0 0.0
        %1608 = vmatprep.subr.mxu0 0.0
        %1609 = vmatpush1.msra.mxu0 0.0
        %1610 = vmatprep.subr.mxu0 0.0
        %1611 = vmatpush1.msra.mxu0 0.0
        %1612 = vmatprep.subr.mxu0 0.0
        %1613 = vmatpush1.msra.mxu0 0.0
        %1614 = vmatprep.subr.mxu0 0.0
        %1615 = vmatpush1.msra.mxu0 0.0
        %1616 = vmatprep.subr.mxu0 0.0
        %1617 = vmatpush1.msra.mxu0 0.0
        %1618 = vmatprep.subr.mxu0 0.0
        %1619 = vmatpush1.msra.mxu0 0.0
        %1620 = vmatprep.subr.mxu0 0.0
        %1621 = vmatpush1.msra.mxu0 0.0
        %1622 = vmatprep.subr.mxu0 0.0
        %1623 = vmatpush1.msra.mxu0 0.0
        %1624 = vmatprep.subr.mxu0 0.0
        %1625 = vmatpush1.msra.mxu0 0.0
        %1626 = vmatprep.subr.mxu0 0.0
        %1627 = vmatpush1.msra.mxu0 0.0
        %1628 = vmatprep.subr.mxu0 0.0
        %1629 = vmatpush1.msra.mxu0 0.0
        %1630 = vmatprep.subr.mxu0 0.0
        %1631 = vmatpush1.msra.mxu0 0.0
        %1632 = vmatprep.subr.mxu0 0.0
        %1633 = vmatpush1.msra.mxu0 0.0
        %1634 = vmatprep.subr.mxu0 0.0
        %1635 = vmatpush1.msra.mxu0 0.0
        %1636 = vmatprep.subr.mxu0 0.0
        %1637 = vmatpush1.msra.mxu0 0.0
        %1638 = vmatprep.subr.mxu0 0.0
        %1639 = vmatpush1.msra.mxu0 0.0
        %1640 = vmatprep.subr.mxu0 0.0
        %1641 = vmatpush1.msra.mxu0 0.0
        %1642 = vmatprep.subr.mxu0 0.0
        %1643 = vmatpush1.msra.mxu0 0.0
        %1644 = vmatprep.subr.mxu0 0.0
        %1645 = vmatpush1.msra.mxu0 0.0
        %1646 = vmatprep.subr.mxu0 0.0
        %1647 = vmatpush1.msra.mxu0 0.0
        %1648 = vmatprep.subr.mxu0 0.0
        %1649 = vmatpush1.msra.mxu0 0.0
        %1650 = vmatprep.subr.mxu0 0.0
        %1651 = vmatpush1.msra.mxu0 0.0
        %1652 = vmatprep.mubr.f32.mxu0 0.0
        %1653 = vmatmul.mubr.f32.gmra.mrb[0].mxu0 %v1586
        %v1654 = vpop.f32.mrb[0].mxu0
        %v1655 = vadd.f32 0.0, %v1654
        %v1656 = vpop.f32.mrb[0].mxu0
        %1657 = vdwg.mxu0
        %v1659 = vsel %vm1163, %v1510, 0
        %1661 = vmatprep.subr.mxu0 0.0
        %1662 = vmatpush1.msra.mxu0 %v1160
        %1663 = vmatprep.subr.mxu0 0.0
        %1664 = vmatpush1.msra.mxu0 0.0
        %1665 = vmatprep.subr.mxu0 0.0
        %1666 = vmatpush1.msra.mxu0 0.0
        %1667 = vmatprep.subr.mxu0 0.0
        %1668 = vmatpush1.msra.mxu0 0.0
        %1669 = vmatprep.subr.mxu0 0.0
        %1670 = vmatpush1.msra.mxu0 0.0
        %1671 = vmatprep.subr.mxu0 0.0
        %1672 = vmatpush1.msra.mxu0 0.0
        %1673 = vmatprep.subr.mxu0 0.0
        %1674 = vmatpush1.msra.mxu0 0.0
        %1675 = vmatprep.subr.mxu0 0.0
        %1676 = vmatpush1.msra.mxu0 0.0
        %1677 = vmatprep.subr.mxu0 0.0
        %1678 = vmatpush1.msra.mxu0 0.0
        %1679 = vmatprep.subr.mxu0 0.0
        %1680 = vmatpush1.msra.mxu0 0.0
        %1681 = vmatprep.subr.mxu0 0.0
        %1682 = vmatpush1.msra.mxu0 0.0
        %1683 = vmatprep.subr.mxu0 0.0
        %1684 = vmatpush1.msra.mxu0 0.0
        %1685 = vmatprep.subr.mxu0 0.0
        %1686 = vmatpush1.msra.mxu0 0.0
        %1687 = vmatprep.subr.mxu0 0.0
        %1688 = vmatpush1.msra.mxu0 0.0
        %1689 = vmatprep.subr.mxu0 0.0
        %1690 = vmatpush1.msra.mxu0 0.0
        %1691 = vmatprep.subr.mxu0 0.0
        %1692 = vmatpush1.msra.mxu0 0.0
        %1693 = vmatprep.subr.mxu0 0.0
        %1694 = vmatpush1.msra.mxu0 0.0
        %1695 = vmatprep.subr.mxu0 0.0
        %1696 = vmatpush1.msra.mxu0 0.0
        %1697 = vmatprep.subr.mxu0 0.0
        %1698 = vmatpush1.msra.mxu0 0.0
        %1699 = vmatprep.subr.mxu0 0.0
        %1700 = vmatpush1.msra.mxu0 0.0
        %1701 = vmatprep.subr.mxu0 0.0
        %1702 = vmatpush1.msra.mxu0 0.0
        %1703 = vmatprep.subr.mxu0 0.0
        %1704 = vmatpush1.msra.mxu0 0.0
        %1705 = vmatprep.subr.mxu0 0.0
        %1706 = vmatpush1.msra.mxu0 0.0
        %1707 = vmatprep.subr.mxu0 0.0
        %1708 = vmatpush1.msra.mxu0 0.0
        %1709 = vmatprep.subr.mxu0 0.0
        %1710 = vmatpush1.msra.mxu0 0.0
        %1711 = vmatprep.subr.mxu0 0.0
        %1712 = vmatpush1.msra.mxu0 0.0
        %1713 = vmatprep.subr.mxu0 0.0
        %1714 = vmatpush1.msra.mxu0 0.0
        %1715 = vmatprep.subr.mxu0 0.0
        %1716 = vmatpush1.msra.mxu0 0.0
        %1717 = vmatprep.subr.mxu0 0.0
        %1718 = vmatpush1.msra.mxu0 0.0
        %1719 = vmatprep.subr.mxu0 0.0
        %1720 = vmatpush1.msra.mxu0 0.0
        %1721 = vmatprep.subr.mxu0 0.0
        %1722 = vmatpush1.msra.mxu0 0.0
        %1723 = vmatprep.subr.mxu0 0.0
        %1724 = vmatpush1.msra.mxu0 0.0
        %1725 = vmatprep.mubr.f32.mxu0 0.0
        %1726 = vmatmul.mubr.f32.gmra.mrb[0].mxu0 %v1659
        %v1727 = vpop.f32.mrb[0].mxu0
        %v1728 = vadd.f32 0.0, %v1727
        %v1729 = vpop.f32.mrb[0].mxu0
        %1730 = vdwg.mxu0
        %v1732 = vsel %vm1163, %v1511, 0
        %1734 = vmatprep.subr.mxu0 0.0
        %1735 = vmatpush1.msra.mxu0 %v1161
        %1736 = vmatprep.subr.mxu0 0.0
        %1737 = vmatpush1.msra.mxu0 0.0
        %1738 = vmatprep.subr.mxu0 0.0
        %1739 = vmatpush1.msra.mxu0 0.0
        %1740 = vmatprep.subr.mxu0 0.0
        %1741 = vmatpush1.msra.mxu0 0.0
        %1742 = vmatprep.subr.mxu0 0.0
        %1743 = vmatpush1.msra.mxu0 0.0
        %1744 = vmatprep.subr.mxu0 0.0
        %1745 = vmatpush1.msra.mxu0 0.0
        %1746 = vmatprep.subr.mxu0 0.0
        %1747 = vmatpush1.msra.mxu0 0.0
        %1748 = vmatprep.subr.mxu0 0.0
        %1749 = vmatpush1.msra.mxu0 0.0
        %1750 = vmatprep.subr.mxu0 0.0
        %1751 = vmatpush1.msra.mxu0 0.0
        %1752 = vmatprep.subr.mxu0 0.0
        %1753 = vmatpush1.msra.mxu0 0.0
        %1754 = vmatprep.subr.mxu0 0.0
        %1755 = vmatpush1.msra.mxu0 0.0
        %1756 = vmatprep.subr.mxu0 0.0
        %1757 = vmatpush1.msra.mxu0 0.0
        %1758 = vmatprep.subr.mxu0 0.0
        %1759 = vmatpush1.msra.mxu0 0.0
        %1760 = vmatprep.subr.mxu0 0.0
        %1761 = vmatpush1.msra.mxu0 0.0
        %1762 = vmatprep.subr.mxu0 0.0
        %1763 = vmatpush1.msra.mxu0 0.0
        %1764 = vmatprep.subr.mxu0 0.0
        %1765 = vmatpush1.msra.mxu0 0.0
        %1766 = vmatprep.subr.mxu0 0.0
        %1767 = vmatpush1.msra.mxu0 0.0
        %1768 = vmatprep.subr.mxu0 0.0
        %1769 = vmatpush1.msra.mxu0 0.0
        %1770 = vmatprep.subr.mxu0 0.0
        %1771 = vmatpush1.msra.mxu0 0.0
        %1772 = vmatprep.subr.mxu0 0.0
        %1773 = vmatpush1.msra.mxu0 0.0
        %1774 = vmatprep.subr.mxu0 0.0
        %1775 = vmatpush1.msra.mxu0 0.0
        %1776 = vmatprep.subr.mxu0 0.0
        %1777 = vmatpush1.msra.mxu0 0.0
        %1778 = vmatprep.subr.mxu0 0.0
        %1779 = vmatpush1.msra.mxu0 0.0
        %1780 = vmatprep.subr.mxu0 0.0
        %1781 = vmatpush1.msra.mxu0 0.0
        %1782 = vmatprep.subr.mxu0 0.0
        %1783 = vmatpush1.msra.mxu0 0.0
        %1784 = vmatprep.subr.mxu0 0.0
        %1785 = vmatpush1.msra.mxu0 0.0
        %1786 = vmatprep.subr.mxu0 0.0
        %1787 = vmatpush1.msra.mxu0 0.0
        %1788 = vmatprep.subr.mxu0 0.0
        %1789 = vmatpush1.msra.mxu0 0.0
        %1790 = vmatprep.subr.mxu0 0.0
        %1791 = vmatpush1.msra.mxu0 0.0
        %1792 = vmatprep.subr.mxu0 0.0
        %1793 = vmatpush1.msra.mxu0 0.0
        %1794 = vmatprep.subr.mxu0 0.0
        %1795 = vmatpush1.msra.mxu0 0.0
        %1796 = vmatprep.subr.mxu0 0.0
        %1797 = vmatpush1.msra.mxu0 0.0
        %1798 = vmatprep.mubr.f32.mxu0 0.0
        %1799 = vmatmul.mubr.f32.gmra.mrb[0].mxu0 %v1732
        %v1800 = vpop.f32.mrb[0].mxu0
        %v1801 = vadd.f32 0.0, %v1800
        %v1802 = vpop.f32.mrb[0].mxu0
        %1803 = vdwg.mxu0
        %v1804 = vcombine.low %v1582, %v1728
        %v1805 = vcombine.high %v1582, %v1728
        %v1807 = vunpack.c.l.s4 1983009808
        %v1808 = vunpack.c.0.s8 %v1807
        %v1809 = vlaneseq
        %v1810 = vshrl.u32 %v1809, 7
        %v1811 = vsub.s32 %v1808, %v1810
        %v1812 = vrot.slane %v1804, %v1811
        %v1814 = vunpack.c.l.s4 1983009808
        %v1815 = vunpack.c.0.s8 %v1814
        %v1816 = vlaneseq
        %v1817 = vshrl.u32 %v1816, 7
        %v1818 = vsub.s32 %v1815, %v1817
        %v1819 = vrot.slane %v1805, %v1818
        %v1820 = vcombine.low %v1655, %v1801
        %v1821 = vcombine.high %v1655, %v1801
        %v1823 = vunpack.c.l.s4 1983009808
        %v1824 = vunpack.c.0.s8 %v1823
        %v1825 = vlaneseq
        %v1826 = vshrl.u32 %v1825, 7
        %v1827 = vsub.s32 %v1824, %v1826
        %v1828 = vrot.slane %v1820, %v1827
        %v1830 = vunpack.c.l.s4 1983009808
        %v1831 = vunpack.c.0.s8 %v1830
        %v1832 = vlaneseq
        %v1833 = vshrl.u32 %v1832, 7
        %v1834 = vsub.s32 %v1831, %v1833
        %v1835 = vrot.slane %v1821, %v1834
        %v1836 = vcombine.low %v1812, %v1828
        %v1837 = vcombine.high %v1812, %v1828
        %v1839 = vunpack.c.l.s4 1934713408
        %v1840 = vunpack.c.0.s8 %v1839
        %v1841 = vlaneseq
        %v1842 = vshrl.u32 %v1841, 7
        %v1843 = vsub.s32 %v1840, %v1842
        %v1844 = vrot.slane %v1836, %v1843
        %v1846 = vunpack.c.l.s4 1934713408
        %v1847 = vunpack.c.0.s8 %v1846
        %v1848 = vlaneseq
        %v1849 = vshrl.u32 %v1848, 7
        %v1850 = vsub.s32 %v1847, %v1849
        %v1851 = vrot.slane %v1837, %v1850
        %v1852 = vcombine.low %v1819, %v1835
        %v1853 = vcombine.high %v1819, %v1835
        %v1855 = vunpack.c.l.s4 1934713408
        %v1856 = vunpack.c.0.s8 %v1855
        %v1857 = vlaneseq
        %v1858 = vshrl.u32 %v1857, 7
        %v1859 = vsub.s32 %v1856, %v1858
        %v1860 = vrot.slane %v1852, %v1859
        %v1862 = vunpack.c.l.s4 1934713408
        %v1863 = vunpack.c.0.s8 %v1862
        %v1864 = vlaneseq
        %v1865 = vshrl.u32 %v1864, 7
        %v1866 = vsub.s32 %v1863, %v1865
        %v1867 = vrot.slane %v1853, %v1866
        %v1868 = vcombine.high %v1844, 0.0
        %v1869 = vcombine.high %v1851, 0.0
        %v1870 = vcombine.high %v1860, 0.0
        %v1871 = vcombine.high %v1867, 0.0
        %v1872 = vcombine.low %v1844, %v1851
        %v1874 = vunpack.c.l.s4 1983009808
        %v1875 = vunpack.c.0.s8 %v1874
        %v1876 = vlaneseq
        %v1877 = vshrl.u32 %v1876, 7
        %v1878 = vsub.s32 %v1875, %v1877
        %v1879 = vrot.slane %v1872, %v1878
        %v1880 = vcombine.low %v1868, %v1869
        %v1882 = vunpack.c.l.s4 1983009808
        %v1883 = vunpack.c.0.s8 %v1882
        %v1884 = vlaneseq
        %v1885 = vshrl.u32 %v1884, 7
        %v1886 = vsub.s32 %v1883, %v1885
        %v1887 = vrot.slane %v1880, %v1886
        %v1888 = vcombine.low %v1860, %v1867
        %v1890 = vunpack.c.l.s4 1983009808
        %v1891 = vunpack.c.0.s8 %v1890
        %v1892 = vlaneseq
        %v1893 = vshrl.u32 %v1892, 7
        %v1894 = vsub.s32 %v1891, %v1893
        %v1895 = vrot.slane %v1888, %v1894
        %v1896 = vcombine.low %v1870, %v1871
        %v1898 = vunpack.c.l.s4 1983009808
        %v1899 = vunpack.c.0.s8 %v1898
        %v1900 = vlaneseq
        %v1901 = vshrl.u32 %v1900, 7
        %v1902 = vsub.s32 %v1899, %v1901
        %v1903 = vrot.slane %v1896, %v1902
        %v1904 = vcombine.low %v1879, %v1887
        %v1905 = vcombine.high %v1879, %v1887
        %v1907 = vunpack.c.l.s4 1934713408
        %v1908 = vunpack.c.0.s8 %v1907
        %v1909 = vlaneseq
        %v1910 = vshrl.u32 %v1909, 7
        %v1911 = vsub.s32 %v1908, %v1910
        %v1912 = vrot.slane %v1904, %v1911
        %v1914 = vunpack.c.l.s4 1934713408
        %v1915 = vunpack.c.0.s8 %v1914
        %v1916 = vlaneseq
        %v1917 = vshrl.u32 %v1916, 7
        %v1918 = vsub.s32 %v1915, %v1917
        %v1919 = vrot.slane %v1905, %v1918
        %v1920 = vcombine.low %v1895, %v1903
        %v1921 = vcombine.high %v1895, %v1903
        %v1923 = vunpack.c.l.s4 1934713408
        %v1924 = vunpack.c.0.s8 %v1923
        %v1925 = vlaneseq
        %v1926 = vshrl.u32 %v1925, 7
        %v1927 = vsub.s32 %v1924, %v1926
        %v1928 = vrot.slane %v1920, %v1927
        %v1930 = vunpack.c.l.s4 1934713408
        %v1931 = vunpack.c.0.s8 %v1930
        %v1932 = vlaneseq
        %v1933 = vshrl.u32 %v1932, 7
        %v1934 = vsub.s32 %v1931, %v1933
        %v1935 = vrot.slane %v1921, %v1934
        %v1936 = vcombine.low %v1912, %v1928
        %v1937 = vcombine.high %v1912, %v1928
        %v1938 = vcombine.low %v1919, %v1935
        %v1939 = vcombine.high %v1919, %v1935
        %1941 = vrot.lane.b32.xlu0 %v1937, 8
        %v1942 = vpop.permute.xlu0 %1941
        %1945 = vrot.lane.b32.xlu0 %v1938, 16
        %v1946 = vpop.permute.xlu0 %1945
        %1949 = vrot.lane.b32.xlu0 %v1939, 24
        %v1950 = vpop.permute.xlu0 %1949
        %v1952 = vsel %vm1163, %v1936, %v1942
        %vm1953 = vcmask 130048
        %v1954 = vsel %vm1953, %v1952, %v1946
        %vm1955 = vcmask 195584
        %v1956 = vsel %vm1955, %v1954, %v1950
        %s1957 = scalar_lea.vmem [#allocation2], 96
        %v1958 = vld [vmem:[%s1957] sm:$0xff]
        %v1959 = vld [vmem:[%s1957 + $0x8] sm:$0xff]
        %v1960 = vld [vmem:[%s1957 + $0x10] sm:$0xff]
        %v1961 = vld [vmem:[%s1957 + $0x18] sm:$0xff]
        %s1962 = scalar_lea.vmem %s4, 3
        %v1963 = vld [vmem:[%s1962] sm:$0x1]
        %v1965 = vlaneseq
        %v1966 = vshrl.u32 %v1965, 7
        %v1967 = vsub.s32 0, %v1966
        %v1968 = vrot.slane %v1963, %v1967
        %v1971 = vsel %vm480, %v1956, 0
        %1973 = vmatprep.subr.mxu0 0.0
        %1974 = vmatpush1.msra.mxu0 %v1958
        %1975 = vmatprep.subr.mxu0 0.0
        %1976 = vmatpush1.msra.mxu0 %v1959
        %1977 = vmatprep.subr.mxu0 0.0
        %1978 = vmatpush1.msra.mxu0 %v1960
        %1979 = vmatprep.subr.mxu0 0.0
        %1980 = vmatpush1.msra.mxu0 %v1961
        %1981 = vmatprep.subr.mxu0 0.0
        %1982 = vmatpush1.msra.mxu0 0.0
        %1983 = vmatprep.subr.mxu0 0.0
        %1984 = vmatpush1.msra.mxu0 0.0
        %1985 = vmatprep.subr.mxu0 0.0
        %1986 = vmatpush1.msra.mxu0 0.0
        %1987 = vmatprep.subr.mxu0 0.0
        %1988 = vmatpush1.msra.mxu0 0.0
        %1989 = vmatprep.subr.mxu0 0.0
        %1990 = vmatpush1.msra.mxu0 0.0
        %1991 = vmatprep.subr.mxu0 0.0
        %1992 = vmatpush1.msra.mxu0 0.0
        %1993 = vmatprep.subr.mxu0 0.0
        %1994 = vmatpush1.msra.mxu0 0.0
        %1995 = vmatprep.subr.mxu0 0.0
        %1996 = vmatpush1.msra.mxu0 0.0
        %1997 = vmatprep.subr.mxu0 0.0
        %1998 = vmatpush1.msra.mxu0 0.0
        %1999 = vmatprep.subr.mxu0 0.0
        %2000 = vmatpush1.msra.mxu0 0.0
        %2001 = vmatprep.subr.mxu0 0.0
        %2002 = vmatpush1.msra.mxu0 0.0
        %2003 = vmatprep.subr.mxu0 0.0
        %2004 = vmatpush1.msra.mxu0 0.0
        %2005 = vmatprep.subr.mxu0 0.0
        %2006 = vmatpush1.msra.mxu0 0.0
        %2007 = vmatprep.subr.mxu0 0.0
        %2008 = vmatpush1.msra.mxu0 0.0
        %2009 = vmatprep.subr.mxu0 0.0
        %2010 = vmatpush1.msra.mxu0 0.0
        %2011 = vmatprep.subr.mxu0 0.0
        %2012 = vmatpush1.msra.mxu0 0.0
        %2013 = vmatprep.subr.mxu0 0.0
        %2014 = vmatpush1.msra.mxu0 0.0
        %2015 = vmatprep.subr.mxu0 0.0
        %2016 = vmatpush1.msra.mxu0 0.0
        %2017 = vmatprep.subr.mxu0 0.0
        %2018 = vmatpush1.msra.mxu0 0.0
        %2019 = vmatprep.subr.mxu0 0.0
        %2020 = vmatpush1.msra.mxu0 0.0
        %2021 = vmatprep.subr.mxu0 0.0
        %2022 = vmatpush1.msra.mxu0 0.0
        %2023 = vmatprep.subr.mxu0 0.0
        %2024 = vmatpush1.msra.mxu0 0.0
        %2025 = vmatprep.subr.mxu0 0.0
        %2026 = vmatpush1.msra.mxu0 0.0
        %2027 = vmatprep.subr.mxu0 0.0
        %2028 = vmatpush1.msra.mxu0 0.0
        %2029 = vmatprep.subr.mxu0 0.0
        %2030 = vmatpush1.msra.mxu0 0.0
        %2031 = vmatprep.subr.mxu0 0.0
        %2032 = vmatpush1.msra.mxu0 0.0
        %2033 = vmatprep.subr.mxu0 0.0
        %2034 = vmatpush1.msra.mxu0 0.0
        %2035 = vmatprep.subr.mxu0 0.0
        %2036 = vmatpush1.msra.mxu0 0.0
        %2037 = vmatprep.mubr.f32.mxu0 0.0
        %2038 = vmatmul.mubr.f32.gmra.mrb[0].mxu0 %v1971
        %v2039 = vpop.f32.mrb[0].mxu0
        %v2040 = vadd.f32 %v1968, %v2039
        %v2041 = vpop.f32.mrb[0].mxu0
        %2042 = vdwg.mxu0
        %v2043 = vadd.f32 %v467, %v2040
        %v2044 = vld [vmem:[%s9] sm:$0x1]
        %v2045 = vld [vmem:[%s10] sm:$0x1]
        %v2046 = vsel %vm480, %v2043, 0.0
        %2047 = vadd.xlane.f32.xlu0 %v2046
        %v2048 = vpop.xlane.xlu0 %2047
        %v2049 = vrcp.pop 32.0
        %v2050 = vmul.f32 %v2048, %v2049
        %v2051 = vsub.f32 %v2043, %v2050
        %v2052 = vmul.f32 %v2051, %v2051
        %v2053 = vsel %vm480, %v2052, 0.0
        %2054 = vadd.xlane.f32.xlu0 %v2053
        %v2055 = vpop.xlane.xlu0 %2054
        %v2056 = vmul.f32 %v2055, %v2049
        %v2057 = vadd.f32 %v2056, 1e-05
        %v2058 = vrsqrt.pop %v2057
        %v2059 = vmul.f32 %v2051, %v2058
        %v2061 = vlaneseq
        %v2062 = vshrl.u32 %v2061, 7
        %v2063 = vsub.s32 0, %v2062
        %v2064 = vrot.slane %v2044, %v2063
        %v2066 = vmul.f32 %v2059, %v2064
        %v2068 = vlaneseq
        %v2069 = vshrl.u32 %v2068, 7
        %v2070 = vsub.s32 0, %v2069
        %v2071 = vrot.slane %v2045, %v2070
        %v2073 = vadd.f32 %v2066, %v2071
        %v2074 = vld [vmem:[%s5] sm:$0xff]
        %v2075 = vld [vmem:[%s5 + $0x8] sm:$0xff]
        %v2076 = vld [vmem:[%s5 + $0x10] sm:$0xff]
        %v2077 = vld [vmem:[%s5 + $0x18] sm:$0xff]
        %v2078 = vld [vmem:[%s6] sm:$0x1]
        %v2080 = vlaneseq
        %v2081 = vshrl.u32 %v2080, 7
        %v2082 = vsub.s32 0, %v2081
        %v2083 = vrot.slane %v2078, %v2082
        %v2086 = vsel %vm480, %v2073, 0
        %2088 = vmatprep.subr.mxu0 0.0
        %2089 = vmatpush1.msra.mxu0 %v2074
        %2090 = vmatprep.subr.mxu0 0.0
        %2091 = vmatpush1.msra.mxu0 %v2075
        %2092 = vmatprep.subr.mxu0 0.0
        %2093 = vmatpush1.msra.mxu0 %v2076
        %2094 = vmatprep.subr.mxu0 0.0
        %2095 = vmatpush1.msra.mxu0 %v2077
        %2096 = vmatprep.subr.mxu0 0.0
        %2097 = vmatpush1.msra.mxu0 0.0
        %2098 = vmatprep.subr.mxu0 0.0
        %2099 = vmatpush1.msra.mxu0 0.0
        %2100 = vmatprep.subr.mxu0 0.0
        %2101 = vmatpush1.msra.mxu0 0.0
        %2102 = vmatprep.subr.mxu0 0.0
        %2103 = vmatpush1.msra.mxu0 0.0
        %2104 = vmatprep.subr.mxu0 0.0
        %2105 = vmatpush1.msra.mxu0 0.0
        %2106 = vmatprep.subr.mxu0 0.0
        %2107 = vmatpush1.msra.mxu0 0.0
        %2108 = vmatprep.subr.mxu0 0.0
        %2109 = vmatpush1.msra.mxu0 0.0
        %2110 = vmatprep.subr.mxu0 0.0
        %2111 = vmatpush1.msra.mxu0 0.0
        %2112 = vmatprep.subr.mxu0 0.0
        %2113 = vmatpush1.msra.mxu0 0.0
        %2114 = vmatprep.subr.mxu0 0.0
        %2115 = vmatpush1.msra.mxu0 0.0
        %2116 = vmatprep.subr.mxu0 0.0
        %2117 = vmatpush1.msra.mxu0 0.0
        %2118 = vmatprep.subr.mxu0 0.0
        %2119 = vmatpush1.msra.mxu0 0.0
        %2120 = vmatprep.subr.mxu0 0.0
        %2121 = vmatpush1.msra.mxu0 0.0
        %2122 = vmatprep.subr.mxu0 0.0
        %2123 = vmatpush1.msra.mxu0 0.0
        %2124 = vmatprep.subr.mxu0 0.0
        %2125 = vmatpush1.msra.mxu0 0.0
        %2126 = vmatprep.subr.mxu0 0.0
        %2127 = vmatpush1.msra.mxu0 0.0
        %2128 = vmatprep.subr.mxu0 0.0
        %2129 = vmatpush1.msra.mxu0 0.0
        %2130 = vmatprep.subr.mxu0 0.0
        %2131 = vmatpush1.msra.mxu0 0.0
        %2132 = vmatprep.subr.mxu0 0.0
        %2133 = vmatpush1.msra.mxu0 0.0
        %2134 = vmatprep.subr.mxu0 0.0
        %2135 = vmatpush1.msra.mxu0 0.0
        %2136 = vmatprep.subr.mxu0 0.0
        %2137 = vmatpush1.msra.mxu0 0.0
        %2138 = vmatprep.subr.mxu0 0.0
        %2139 = vmatpush1.msra.mxu0 0.0
        %2140 = vmatprep.subr.mxu0 0.0
        %2141 = vmatpush1.msra.mxu0 0.0
        %2142 = vmatprep.subr.mxu0 0.0
        %2143 = vmatpush1.msra.mxu0 0.0
        %2144 = vmatprep.subr.mxu0 0.0
        %2145 = vmatpush1.msra.mxu0 0.0
        %2146 = vmatprep.subr.mxu0 0.0
        %2147 = vmatpush1.msra.mxu0 0.0
        %2148 = vmatprep.subr.mxu0 0.0
        %2149 = vmatpush1.msra.mxu0 0.0
        %2150 = vmatprep.subr.mxu0 0.0
        %2151 = vmatpush1.msra.mxu0 0.0
        %2152 = vmatprep.mubr.f32.mxu0 0.0
        %2153 = vmatmul.mubr.f32.gmra.mrb[0].mxu0 %v2086
        %v2154 = vpop.f32.mrb[0].mxu0
        %v2155 = vadd.f32 %v2083, %v2154
        %v2156 = vpop.f32.mrb[0].mxu0
        %2157 = vdwg.mxu0
        %v2158 = vmax.f32 %v2155, 0.0
        %v2159 = vld [vmem:[%s7] sm:$0xff]
        %v2160 = vld [vmem:[%s7 + $0x8] sm:$0xff]
        %v2161 = vld [vmem:[%s7 + $0x10] sm:$0xff]
        %v2162 = vld [vmem:[%s7 + $0x18] sm:$0xff]
        %v2163 = vld [vmem:[%s7 + $0x20] sm:$0xff]
        %v2164 = vld [vmem:[%s7 + $0x28] sm:$0xff]
        %v2165 = vld [vmem:[%s7 + $0x30] sm:$0xff]
        %v2166 = vld [vmem:[%s7 + $0x38] sm:$0xff]
        %v2167 = vld [vmem:[%s8] sm:$0x1]
        %v2169 = vlaneseq
        %v2170 = vshrl.u32 %v2169, 7
        %v2171 = vsub.s32 0, %v2170
        %v2172 = vrot.slane %v2167, %v2171
        %vm2174 = vcmask 523264
        %v2176 = vsel %vm2174, %v2158, 0
        %2178 = vmatprep.subr.mxu0 0.0
        %2179 = vmatpush1.msra.mxu0 %v2159
        %2180 = vmatprep.subr.mxu0 0.0
        %2181 = vmatpush1.msra.mxu0 %v2160
        %2182 = vmatprep.subr.mxu0 0.0
        %2183 = vmatpush1.msra.mxu0 %v2161
        %2184 = vmatprep.subr.mxu0 0.0
        %2185 = vmatpush1.msra.mxu0 %v2162
        %2186 = vmatprep.subr.mxu0 0.0
        %2187 = vmatpush1.msra.mxu0 %v2163
        %2188 = vmatprep.subr.mxu0 0.0
        %2189 = vmatpush1.msra.mxu0 %v2164
        %2190 = vmatprep.subr.mxu0 0.0
        %2191 = vmatpush1.msra.mxu0 %v2165
        %2192 = vmatprep.subr.mxu0 0.0
        %2193 = vmatpush1.msra.mxu0 %v2166
        %2194 = vmatprep.subr.mxu0 0.0
        %2195 = vmatpush1.msra.mxu0 0.0
        %2196 = vmatprep.subr.mxu0 0.0
        %2197 = vmatpush1.msra.mxu0 0.0
        %2198 = vmatprep.subr.mxu0 0.0
        %2199 = vmatpush1.msra.mxu0 0.0
        %2200 = vmatprep.subr.mxu0 0.0
        %2201 = vmatpush1.msra.mxu0 0.0
        %2202 = vmatprep.subr.mxu0 0.0
        %2203 = vmatpush1.msra.mxu0 0.0
        %2204 = vmatprep.subr.mxu0 0.0
        %2205 = vmatpush1.msra.mxu0 0.0
        %2206 = vmatprep.subr.mxu0 0.0
        %2207 = vmatpush1.msra.mxu0 0.0
        %2208 = vmatprep.subr.mxu0 0.0
        %2209 = vmatpush1.msra.mxu0 0.0
        %2210 = vmatprep.subr.mxu0 0.0
        %2211 = vmatpush1.msra.mxu0 0.0
        %2212 = vmatprep.subr.mxu0 0.0
        %2213 = vmatpush1.msra.mxu0 0.0
        %2214 = vmatprep.subr.mxu0 0.0
        %2215 = vmatpush1.msra.mxu0 0.0
        %2216 = vmatprep.subr.mxu0 0.0
        %2217 = vmatpush1.msra.mxu0 0.0
        %2218 = vmatprep.subr.mxu0 0.0
        %2219 = vmatpush1.msra.mxu0 0.0
        %2220 = vmatprep.subr.mxu0 0.0
        %2221 = vmatpush1.msra.mxu0 0.0
        %2222 = vmatprep.subr.mxu0 0.0
        %2223 = vmatpush1.msra.mxu0 0.0
        %2224 = vmatprep.subr.mxu0 0.0
        %2225 = vmatpush1.msra.mxu0 0.0
        %2226 = vmatprep.subr.mxu0 0.0
        %2227 = vmatpush1.msra.mxu0 0.0
        %2228 = vmatprep.subr.mxu0 0.0
        %2229 = vmatpush1.msra.mxu0 0.0
        %2230 = vmatprep.subr.mxu0 0.0
        %2231 = vmatpush1.msra.mxu0 0.0
        %2232 = vmatprep.subr.mxu0 0.0
        %2233 = vmatpush1.msra.mxu0 0.0
        %2234 = vmatprep.subr.mxu0 0.0
        %2235 = vmatpush1.msra.mxu0 0.0
        %2236 = vmatprep.subr.mxu0 0.0
        %2237 = vmatpush1.msra.mxu0 0.0
        %2238 = vmatprep.subr.mxu0 0.0
        %2239 = vmatpush1.msra.mxu0 0.0
        %2240 = vmatprep.subr.mxu0 0.0
        %2241 = vmatpush1.msra.mxu0 0.0
        %2242 = vmatprep.mubr.f32.mxu0 0.0
        %2243 = vmatmul.mubr.f32.gmra.mrb[0].mxu0 %v2176
        %v2244 = vpop.f32.mrb[0].mxu0
        %v2245 = vadd.f32 %v2172, %v2244
        %v2246 = vpop.f32.mrb[0].mxu0
        %2247 = vdwg.mxu0
        %v2248 = vadd.f32 %v2073, %v2245
        %s2249 = scalar_lea.vmem %s9, 1
        %v2250 = vld [vmem:[%s2249] sm:$0x1]
        %s2251 = scalar_lea.vmem %s10, 1
        %v2252 = vld [vmem:[%s2251] sm:$0x1]
        %v2253 = vsel %vm480, %v2248, 0.0
        %2254 = vadd.xlane.f32.xlu0 %v2253
        %v2255 = vpop.xlane.xlu0 %2254
        %v2256 = vmul.f32 %v2255, %v2049
        %v2257 = vsub.f32 %v2248, %v2256
        %v2258 = vmul.f32 %v2257, %v2257
        %v2259 = vsel %vm480, %v2258, 0.0
        %2260 = vadd.xlane.f32.xlu0 %v2259
        %v2261 = vpop.xlane.xlu0 %2260
        %v2262 = vmul.f32 %v2261, %v2049
        %v2263 = vadd.f32 %v2262, 1e-05
        %v2264 = vrsqrt.pop %v2263
        %v2265 = vmul.f32 %v2257, %v2264
        %v2267 = vlaneseq
        %v2268 = vshrl.u32 %v2267, 7
        %v2269 = vsub.s32 0, %v2268
        %v2270 = vrot.slane %v2250, %v2269
        %v2272 = vmul.f32 %v2265, %v2270
        %v2274 = vlaneseq
        %v2275 = vshrl.u32 %v2274, 7
        %v2276 = vsub.s32 0, %v2275
        %v2277 = vrot.slane %v2252, %v2276
        %v2279 = vadd.f32 %v2272, %v2277
        %2280 = vst.msk [vmem:[%s448] sm:$0xff] %vm480, %v2279
        %s2281 = sand.u32 %s298, 1
        %s2282 = scalar_lea.sflag [#allocation4], %s2281
        %s2283 = sand.u32 %s298, 1
        %s2284 = smul.addr %s2283, 8
        %s2285 = scalar_lea.vmem [#allocation5], %s2284
        // Predicated region
        $region69: #{tpu_custom_call.1} parent=63 // pred_check
          %p2286 = pneg %p308
        $region70: #{tpu_custom_call.1} parent=63 // pred_check_branch
          %2288 = sbr.rel (%p2286) target = $region72
        $region71: #{tpu_custom_call.1} parent=63 // pred_region
          %s2290 = ssub.s32 128, 128
          %2291 = vsyncadd %s2282, %s2290
          %s2292 = sadd.s32 %s31, %s30
          %s2293 = smul.addr %s2292, 128
          %s2294 = scalar_lea.hbm %s11, %s2293
          %s2296 = sshll.u32 %s2285, 4
          %s2297 = int_to_ptr.vmem [resolvable:$true] %s2296
          %2299 = dma.vmem_to_hbm [thread:$0]  %s2297, 128, %s2294, %s2282
        $region72: #{tpu_custom_call.1} parent=63 // pred_fallthru
          _
      $region64: #{tpu_custom_call.1} parent=5 // pred_fallthru
        _
      %p2300 = scmp.le.s32.totalorder 2, %s21
      // Predicated region
      $region73: #{tpu_custom_call.1} parent=5 // pred_check
        %p2301 = pneg %p2300
      $region74: #{tpu_custom_call.1} parent=5 // pred_check_branch
        %2303 = sbr.rel (%p2301) target = $region76
      $region75: #{tpu_custom_call.1} parent=5 // pred_region
        %s2304 = ssub.s32 %s21, 2
        // Predicated region
        $region77: #{tpu_custom_call.1} parent=75 // pred_check
          %p2305 = pneg %p314
        $region78: #{tpu_custom_call.1} parent=75 // pred_check_branch
          %2307 = sbr.rel (%p2305) target = $region80
        $region79: #{tpu_custom_call.1} parent=75 // pred_region
          %s2308 = sand.u32 %s299, 1
          %s2309 = scalar_lea.sflag [#allocation4], %s2308
          %s2310 = sand.u32 %s299, 1
          %s2311 = smul.addr %s2310, 8
          %s2312 = scalar_lea.vmem [#allocation5], %s2311
          %2313 = dma.done %s2309, 128
        $region80: #{tpu_custom_call.1} parent=75 // pred_fallthru
          _
      $region76: #{tpu_custom_call.1} parent=5 // pred_fallthru
        _
    $region6: #{tpu_custom_call.1} parent=1 // loop_footer
      %s25 = sadd.s32 1, %s21
    $region7: #{tpu_custom_call.1} parent=1 // loop_footer_branch
      %20 = sbr.rel target = $region3
    $region8: #{tpu_custom_call.1} parent=1 // loop_exit
      _
    %2314 = vsyncpa [#allocation3], 1
    %s2315 = scalar_lea.sflag [#allocation3], 1
    %2316 = vsyncpa %s2315, 1
    %2317 = vsyncpa [#allocation4], 1
    %s2318 = scalar_lea.sflag [#allocation4], 1
    %2319 = vsyncpa %s2318, 1

</llo_original>
